<compile_context>
chip_gen: v7x
topology: tpu7x:2x2x1
jax: 0.10.0
libtpu: 0.0.40
codegen_flags: <defaults>
</compile_context>

<pallas_src>
import jax
import jax.numpy as jnp
import numpy as np
from jax.experimental import pallas as pl
from jax.experimental.pallas import tpu as pltpu

H = 32    # hidden_channels (logical)
P = 128   # lane-padded hidden width used inside the kernel


# ------------------------------------------------------------------ kernel

def _cgcnn_kernel(x_ref, ea_ref, dst_ref, src_ref,
                  wn_ref, bn_ref, we_ref, be_ref,
                  w1_ref, b1_ref, w2_ref, b2_ref,
                  wa_ref, ba_ref, o_ref):
    f32 = jnp.float32

    # ---- embeddings (lane-padded to P; padded cols are exactly 0) ----
    x = jnp.dot(x_ref[...], wn_ref[...], preferred_element_type=f32) + bn_ref[...]   # (N, P)
    e = jnp.dot(ea_ref[...], we_ref[...], preferred_element_type=f32) + be_ref[...]  # (E, P)

    # one-hot gather/scatter operands: bf16 0/1 -> f32 promotion is exact
    dst = dst_ref[...].astype(f32)   # (E, N)
    src = src_ref[...].astype(f32)   # (E, N)

    def conv_relu(x, w_ref, b_ref):
        # gather endpoints via one-hot matmuls (MXU)
        xi = jnp.dot(dst, x, preferred_element_type=f32)   # (E, P)  x_i = x[dst]
        xj = jnp.dot(src, x, preferred_element_type=f32)   # (E, P)  x_j = x[src]

        # single merged matmul: z = [x_i, x_j, e] @ [Wf | Ws] + [bf | bs]  -> (E, 2P)
        w = w_ref[...]
        z = (jnp.dot(xi, w[0:P, :], preferred_element_type=f32)
             + jnp.dot(xj, w[P:2 * P, :], preferred_element_type=f32)
             + jnp.dot(e, w[2 * P:3 * P, :], preferred_element_type=f32)
             + b_ref[...])
        zf = z[:, 0:P]          # gate pre-activation
        zs = z[:, P:2 * P]      # softplus pre-activation

        # sigmoid via EUP reciprocal (co-issues with VALU work)
        gate = pl.reciprocal(1.0 + jnp.exp(-zf), approx=True)
        soft = jnp.maximum(zs, 0.0) + jnp.log1p(jnp.exp(-jnp.abs(zs)))   # softplus
        msg = gate * soft                                                 # (E, P)

        # scatter_add(msg -> dst) == dst_oh^T @ msg, done without materializing the
        # transpose: contract both operands on axis 0.
        agg = jax.lax.dot_general(dst, msg, (((0,), (0,)), ((), ())),
                                  preferred_element_type=f32)             # (N, P)
        return jnp.maximum(agg + x, 0.0)                                  # residual + ReLU

    x = conv_relu(x, w1_ref, b1_ref)
    x = conv_relu(x, w2_ref, b2_ref)

    # attention linear (lane-dense (N, P) store; padded cols are exactly 0)
    o_ref[...] = jnp.dot(x, wa_ref[...], preferred_element_type=f32) + ba_ref[...]


# ------------------------------------------------------------------ wrapper

_VMEM = pl.BlockSpec(memory_space=pltpu.MemorySpace.VMEM)


def _pad_to(a, shape):
    return jnp.pad(a, [(0, t - s) for s, t in zip(a.shape, shape)])


def _merge_conv_weights(wf, bf, ws, bs):
    """Pack Wf (3H,H) / Ws (3H,H) into one zero-padded (3P, 2P) weight and (1, 2P) bias."""
    w = jnp.zeros((3 * P, 2 * P), jnp.float32)
    for blk in range(3):
        w = w.at[blk * P:blk * P + H, 0:H].set(wf[blk * H:(blk + 1) * H, :])
        w = w.at[blk * P:blk * P + H, P:P + H].set(ws[blk * H:(blk + 1) * H, :])
    b = jnp.zeros((1, 2 * P), jnp.float32)
    b = b.at[0, 0:H].set(bf)
    b = b.at[0, P:P + H].set(bs)
    return w, b


@jax.jit
def cgcnn_forward(params, x, edge_index, edge_attr):
    N, Fn = x.shape
    E, Fe = edge_attr.shape

    src = edge_index[0]
    dst = edge_index[1]
    # bf16 halves HBM/VMEM footprint of the dominant (E, N) arrays; exact for 0/1.
    src_oh = jax.nn.one_hot(src, N, dtype=jnp.bfloat16)   # (E, N)
    dst_oh = jax.nn.one_hot(dst, N, dtype=jnp.bfloat16)   # (E, N)

    # lane-pad all weights/biases to P=128 so every kernel tile/store is lane-dense
    wn = _pad_to(params["wn"], (Fn, P))
    bn = _pad_to(params["bn"].reshape(1, H), (1, P))
    we = _pad_to(params["we"], (Fe, P))
    be = _pad_to(params["be"].reshape(1, H), (1, P))
    w1, b1 = _merge_conv_weights(params["wf1"], params["bf1"], params["ws1"], params["bs1"])
    w2, b2 = _merge_conv_weights(params["wf2"], params["bf2"], params["ws2"], params["bs2"])
    wa = _pad_to(params["wa"], (P, P))
    ba = _pad_to(params["ba"].reshape(1, H), (1, P))

    out = pl.pallas_call(
        _cgcnn_kernel,
        out_shape=jax.ShapeDtypeStruct((N, P), jnp.float32),
        in_specs=[_VMEM] * 14,
        out_specs=_VMEM,
        compiler_params=pltpu.CompilerParams(vmem_limit_bytes=32 * 1024 * 1024),
    )(x, edge_attr, dst_oh, src_oh, wn, bn, we, be, w1, b1, w2, b2, wa, ba)

    return out[:, :H]


# ------------------------------------------------------------------ reference (pure JAX)

def cgcnn_reference(params, x, edge_index, edge_attr):
    def lin(x, w, b):
        return x @ w + b

    def conv(x, e, wf, bf, ws, bs):
        src, dst = edge_index[0], edge_index[1]
        xi = x[dst]
        xj = x[src]
        z = jnp.concatenate([xi, xj, e], axis=-1)
        msg = jax.nn.sigmoid(z @ wf + bf) * jax.nn.softplus(z @ ws + bs)
        agg = jnp.zeros_like(x).at[dst].add(msg)
        return agg + x

    x = lin(x, params["wn"], params["bn"])
    e = lin(edge_attr, params["we"], params["be"])
    x = jax.nn.relu(conv(x, e, params["wf1"], params["bf1"], params["ws1"], params["bs1"]))
    x = jax.nn.relu(conv(x, e, params["wf2"], params["bf2"], params["ws2"], params["bs2"]))
    x = lin(x, params["wa"], params["ba"])
    return x


# ------------------------------------------------------------------ main

if __name__ == "__main__":
    node_features, edge_features = 4, 6
    N, E = 8, 16

    key = jax.random.PRNGKey(0)
    ks = jax.random.split(key, 16)

    def rnd(k, shape, scale=0.1):
        return (scale * jax.random.normal(k, shape)).astype(jnp.float32)

    params = {
        "wn": rnd(ks[0], (node_features, H)), "bn": rnd(ks[1], (H,)),
        "we": rnd(ks[2], (edge_features, H)), "be": rnd(ks[3], (H,)),
        "wf1": rnd(ks[4], (3 * H, H)), "bf1": rnd(ks[5], (H,)),
        "ws1": rnd(ks[6], (3 * H, H)), "bs1": rnd(ks[7], (H,)),
        "wf2": rnd(ks[8], (3 * H, H)), "bf2": rnd(ks[9], (H,)),
        "ws2": rnd(ks[10], (3 * H, H)), "bs2": rnd(ks[11], (H,)),
        "wa": rnd(ks[12], (H, H)), "ba": rnd(ks[13], (H,)),
    }

    x = rnd(ks[14], (N, node_features), scale=1.0)
    edge_attr = rnd(ks[15], (E, edge_features), scale=1.0)
    edge_index = jnp.stack([
        jnp.arange(E, dtype=jnp.int32) % N,              # src
        (jnp.arange(E, dtype=jnp.int32) * 3 + 1) % N,    # dst
    ], axis=0)

    out = cgcnn_forward(params, x, edge_index, edge_attr)
    out = jax.block_until_ready(out)

    ref = cgcnn_reference(params, x, edge_index, edge_attr)
    # slightly loosened tolerance for the EUP approximate-reciprocal sigmoid
    np.testing.assert_allclose(np.asarray(out), np.asarray(ref), atol=2e-3, rtol=2e-3)

    print("KERNEL_OK")
</pallas_src>

<mosaic_0001>
module attributes {stable_mosaic.version = 11 : i64} {
  func.func @_cgcnn_kernel(%arg0: memref<8x4xf32, #tpu.memory_space<vmem>>, %arg1: memref<16x6xf32, #tpu.memory_space<vmem>>, %arg2: memref<16x8xbf16, #tpu.memory_space<vmem>>, %arg3: memref<16x8xbf16, #tpu.memory_space<vmem>>, %arg4: memref<4x128xf32, #tpu.memory_space<vmem>>, %arg5: memref<1x128xf32, #tpu.memory_space<vmem>>, %arg6: memref<6x128xf32, #tpu.memory_space<vmem>>, %arg7: memref<1x128xf32, #tpu.memory_space<vmem>>, %arg8: memref<384x256xf32, #tpu.memory_space<vmem>>, %arg9: memref<1x256xf32, #tpu.memory_space<vmem>>, %arg10: memref<384x256xf32, #tpu.memory_space<vmem>>, %arg11: memref<1x256xf32, #tpu.memory_space<vmem>>, %arg12: memref<128x128xf32, #tpu.memory_space<vmem>>, %arg13: memref<1x128xf32, #tpu.memory_space<vmem>>, %arg14: memref<8x128xf32, #tpu.memory_space<vmem>>) attributes {dimension_semantics = [], scalar_prefetch = 0 : i64, scratch_operands = 0 : i64, tpu.core_type = #tpu.core_type<tc>} {
    %c0 = arith.constant 0 : index
    %c0_0 = arith.constant 0 : index
    %0 = vector.load %arg0[%c0, %c0_0] : memref<8x4xf32, #tpu.memory_space<vmem>>, vector<8x4xf32>
    %c0_1 = arith.constant 0 : index
    %c0_2 = arith.constant 0 : index
    %1 = vector.load %arg4[%c0_1, %c0_2] : memref<4x128xf32, #tpu.memory_space<vmem>>, vector<4x128xf32>
    %cst = arith.constant dense<0.000000e+00> : vector<8x128xf32>
    %2 = tpu.matmul %0, %1, %cst {dimension_numbers = #tpu.dot_dimension_numbers<[1], [0], [0], [1], [0, 0, 1, 1], [], []>} : vector<8x4xf32>, vector<4x128xf32>, vector<8x128xf32> -> vector<8x128xf32>
    %c0_3 = arith.constant 0 : index
    %c0_4 = arith.constant 0 : index
    %3 = vector.load %arg5[%c0_3, %c0_4] : memref<1x128xf32, #tpu.memory_space<vmem>>, vector<1x128xf32>
    %4 = vector.broadcast %3 : vector<1x128xf32> to vector<8x128xf32>
    %5 = arith.addf %2, %4 : vector<8x128xf32>
    %c0_5 = arith.constant 0 : index
    %c0_6 = arith.constant 0 : index
    %6 = vector.load %arg1[%c0_5, %c0_6] : memref<16x6xf32, #tpu.memory_space<vmem>>, vector<16x6xf32>
    %c0_7 = arith.constant 0 : index
    %c0_8 = arith.constant 0 : index
    %7 = vector.load %arg6[%c0_7, %c0_8] : memref<6x128xf32, #tpu.memory_space<vmem>>, vector<6x128xf32>
    %cst_9 = arith.constant dense<0.000000e+00> : vector<16x128xf32>
    %8 = tpu.matmul %6, %7, %cst_9 {dimension_numbers = #tpu.dot_dimension_numbers<[1], [0], [0], [1], [0, 0, 1, 1], [], []>} : vector<16x6xf32>, vector<6x128xf32>, vector<16x128xf32> -> vector<16x128xf32>
    %c0_10 = arith.constant 0 : index
    %c0_11 = arith.constant 0 : index
    %9 = vector.load %arg7[%c0_10, %c0_11] : memref<1x128xf32, #tpu.memory_space<vmem>>, vector<1x128xf32>
    %10 = vector.broadcast %9 : vector<1x128xf32> to vector<16x128xf32>
    %11 = arith.addf %8, %10 : vector<16x128xf32>
    %c0_12 = arith.constant 0 : index
    %c0_13 = arith.constant 0 : index
    %12 = vector.load %arg2[%c0_12, %c0_13] : memref<16x8xbf16, #tpu.memory_space<vmem>>, vector<16x8xbf16>
    %13 = arith.extf %12 : vector<16x8xbf16> to vector<16x8xf32>
    %c0_14 = arith.constant 0 : index
    %c0_15 = arith.constant 0 : index
    %14 = vector.load %arg3[%c0_14, %c0_15] : memref<16x8xbf16, #tpu.memory_space<vmem>>, vector<16x8xbf16>
    %15 = arith.extf %14 : vector<16x8xbf16> to vector<16x8xf32>
    %cst_16 = arith.constant dense<0.000000e+00> : vector<16x128xf32>
    %16 = tpu.matmul %13, %5, %cst_16 {dimension_numbers = #tpu.dot_dimension_numbers<[1], [0], [0], [1], [0, 0, 1, 1], [], []>} : vector<16x8xf32>, vector<8x128xf32>, vector<16x128xf32> -> vector<16x128xf32>
    %cst_17 = arith.constant dense<0.000000e+00> : vector<16x128xf32>
    %17 = tpu.matmul %15, %5, %cst_17 {dimension_numbers = #tpu.dot_dimension_numbers<[1], [0], [0], [1], [0, 0, 1, 1], [], []>} : vector<16x8xf32>, vector<8x128xf32>, vector<16x128xf32> -> vector<16x128xf32>
    %c0_18 = arith.constant 0 : index
    %c0_19 = arith.constant 0 : index
    %18 = vector.load %arg8[%c0_18, %c0_19] : memref<384x256xf32, #tpu.memory_space<vmem>>, vector<384x256xf32>
    %19 = vector.extract_strided_slice %18 {offsets = [0, 0], sizes = [128, 256], strides = [1, 1]} : vector<384x256xf32> to vector<128x256xf32>
    %cst_20 = arith.constant dense<0.000000e+00> : vector<16x256xf32>
    %20 = tpu.matmul %16, %19, %cst_20 {dimension_numbers = #tpu.dot_dimension_numbers<[1], [0], [0], [1], [0, 0, 1, 1], [], []>} : vector<16x128xf32>, vector<128x256xf32>, vector<16x256xf32> -> vector<16x256xf32>
    %21 = vector.extract_strided_slice %18 {offsets = [128, 0], sizes = [128, 256], strides = [1, 1]} : vector<384x256xf32> to vector<128x256xf32>
    %cst_21 = arith.constant dense<0.000000e+00> : vector<16x256xf32>
    %22 = tpu.matmul %17, %21, %cst_21 {dimension_numbers = #tpu.dot_dimension_numbers<[1], [0], [0], [1], [0, 0, 1, 1], [], []>} : vector<16x128xf32>, vector<128x256xf32>, vector<16x256xf32> -> vector<16x256xf32>
    %23 = arith.addf %20, %22 : vector<16x256xf32>
    %24 = vector.extract_strided_slice %18 {offsets = [256, 0], sizes = [128, 256], strides = [1, 1]} : vector<384x256xf32> to vector<128x256xf32>
    %cst_22 = arith.constant dense<0.000000e+00> : vector<16x256xf32>
    %25 = tpu.matmul %11, %24, %cst_22 {dimension_numbers = #tpu.dot_dimension_numbers<[1], [0], [0], [1], [0, 0, 1, 1], [], []>} : vector<16x128xf32>, vector<128x256xf32>, vector<16x256xf32> -> vector<16x256xf32>
    %26 = arith.addf %23, %25 : vector<16x256xf32>
    %c0_23 = arith.constant 0 : index
    %c0_24 = arith.constant 0 : index
    %27 = vector.load %arg9[%c0_23, %c0_24] : memref<1x256xf32, #tpu.memory_space<vmem>>, vector<1x256xf32>
    %28 = vector.broadcast %27 : vector<1x256xf32> to vector<16x256xf32>
    %29 = arith.addf %26, %28 : vector<16x256xf32>
    %30 = vector.extract_strided_slice %29 {offsets = [0, 0], sizes = [16, 128], strides = [1, 1]} : vector<16x256xf32> to vector<16x128xf32>
    %31 = vector.extract_strided_slice %29 {offsets = [0, 128], sizes = [16, 128], strides = [1, 1]} : vector<16x256xf32> to vector<16x128xf32>
    %cst_25 = arith.constant 0.000000e+00 : f32
    %32 = vector.broadcast %cst_25 : f32 to vector<16x128xf32>
    %33 = arith.subf %32, %30 : vector<16x128xf32>
    %34 = math.exp %33 : vector<16x128xf32>
    %cst_26 = arith.constant 1.000000e+00 : f32
    %35 = vector.broadcast %cst_26 : f32 to vector<16x128xf32>
    %36 = arith.addf %35, %34 : vector<16x128xf32>
    %37 = tpu.reciprocal %36 {approx = true} : vector<16x128xf32> -> vector<16x128xf32>
    %cst_27 = arith.constant 0.000000e+00 : f32
    %38 = vector.broadcast %cst_27 : f32 to vector<16x128xf32>
    %39 = arith.maximumf %31, %38 : vector<16x128xf32>
    %40 = math.absf %31 : vector<16x128xf32>
    %cst_28 = arith.constant 0.000000e+00 : f32
    %41 = vector.broadcast %cst_28 : f32 to vector<16x128xf32>
    %42 = arith.subf %41, %40 : vector<16x128xf32>
    %43 = math.exp %42 : vector<16x128xf32>
    %44 = math.log1p %43 : vector<16x128xf32>
    %45 = arith.addf %39, %44 : vector<16x128xf32>
    %46 = arith.mulf %37, %45 : vector<16x128xf32>
    %cst_29 = arith.constant dense<0.000000e+00> : vector<8x128xf32>
    %47 = tpu.matmul %13, %46, %cst_29 {dimension_numbers = #tpu.dot_dimension_numbers<[0], [0], [1], [1], [0, 1, 1, 1], [], []>} : vector<16x8xf32>, vector<16x128xf32>, vector<8x128xf32> -> vector<8x128xf32>
    %48 = arith.addf %47, %5 : vector<8x128xf32>
    %cst_30 = arith.constant 0.000000e+00 : f32
    %49 = vector.broadcast %cst_30 : f32 to vector<8x128xf32>
    %50 = arith.maximumf %48, %49 : vector<8x128xf32>
    %cst_31 = arith.constant dense<0.000000e+00> : vector<16x128xf32>
    %51 = tpu.matmul %13, %50, %cst_31 {dimension_numbers = #tpu.dot_dimension_numbers<[1], [0], [0], [1], [0, 0, 1, 1], [], []>} : vector<16x8xf32>, vector<8x128xf32>, vector<16x128xf32> -> vector<16x128xf32>
    %cst_32 = arith.constant dense<0.000000e+00> : vector<16x128xf32>
    %52 = tpu.matmul %15, %50, %cst_32 {dimension_numbers = #tpu.dot_dimension_numbers<[1], [0], [0], [1], [0, 0, 1, 1], [], []>} : vector<16x8xf32>, vector<8x128xf32>, vector<16x128xf32> -> vector<16x128xf32>
    %c0_33 = arith.constant 0 : index
    %c0_34 = arith.constant 0 : index
    %53 = vector.load %arg10[%c0_33, %c0_34] : memref<384x256xf32, #tpu.memory_space<vmem>>, vector<384x256xf32>
    %54 = vector.extract_strided_slice %53 {offsets = [0, 0], sizes = [128, 256], strides = [1, 1]} : vector<384x256xf32> to vector<128x256xf32>
    %cst_35 = arith.constant dense<0.000000e+00> : vector<16x256xf32>
    %55 = tpu.matmul %51, %54, %cst_35 {dimension_numbers = #tpu.dot_dimension_numbers<[1], [0], [0], [1], [0, 0, 1, 1], [], []>} : vector<16x128xf32>, vector<128x256xf32>, vector<16x256xf32> -> vector<16x256xf32>
    %56 = vector.extract_strided_slice %53 {offsets = [128, 0], sizes = [128, 256], strides = [1, 1]} : vector<384x256xf32> to vector<128x256xf32>
    %cst_36 = arith.constant dense<0.000000e+00> : vector<16x256xf32>
    %57 = tpu.matmul %52, %56, %cst_36 {dimension_numbers = #tpu.dot_dimension_numbers<[1], [0], [0], [1], [0, 0, 1, 1], [], []>} : vector<16x128xf32>, vector<128x256xf32>, vector<16x256xf32> -> vector<16x256xf32>
    %58 = arith.addf %55, %57 : vector<16x256xf32>
    %59 = vector.extract_strided_slice %53 {offsets = [256, 0], sizes = [128, 256], strides = [1, 1]} : vector<384x256xf32> to vector<128x256xf32>
    %cst_37 = arith.constant dense<0.000000e+00> : vector<16x256xf32>
    %60 = tpu.matmul %11, %59, %cst_37 {dimension_numbers = #tpu.dot_dimension_numbers<[1], [0], [0], [1], [0, 0, 1, 1], [], []>} : vector<16x128xf32>, vector<128x256xf32>, vector<16x256xf32> -> vector<16x256xf32>
    %61 = arith.addf %58, %60 : vector<16x256xf32>
    %c0_38 = arith.constant 0 : index
    %c0_39 = arith.constant 0 : index
    %62 = vector.load %arg11[%c0_38, %c0_39] : memref<1x256xf32, #tpu.memory_space<vmem>>, vector<1x256xf32>
    %63 = vector.broadcast %62 : vector<1x256xf32> to vector<16x256xf32>
    %64 = arith.addf %61, %63 : vector<16x256xf32>
    %65 = vector.extract_strided_slice %64 {offsets = [0, 0], sizes = [16, 128], strides = [1, 1]} : vector<16x256xf32> to vector<16x128xf32>
    %66 = vector.extract_strided_slice %64 {offsets = [0, 128], sizes = [16, 128], strides = [1, 1]} : vector<16x256xf32> to vector<16x128xf32>
    %cst_40 = arith.constant 0.000000e+00 : f32
    %67 = vector.broadcast %cst_40 : f32 to vector<16x128xf32>
    %68 = arith.subf %67, %65 : vector<16x128xf32>
    %69 = math.exp %68 : vector<16x128xf32>
    %cst_41 = arith.constant 1.000000e+00 : f32
    %70 = vector.broadcast %cst_41 : f32 to vector<16x128xf32>
    %71 = arith.addf %70, %69 : vector<16x128xf32>
    %72 = tpu.reciprocal %71 {approx = true} : vector<16x128xf32> -> vector<16x128xf32>
    %cst_42 = arith.constant 0.000000e+00 : f32
    %73 = vector.broadcast %cst_42 : f32 to vector<16x128xf32>
    %74 = arith.maximumf %66, %73 : vector<16x128xf32>
    %75 = math.absf %66 : vector<16x128xf32>
    %cst_43 = arith.constant 0.000000e+00 : f32
    %76 = vector.broadcast %cst_43 : f32 to vector<16x128xf32>
    %77 = arith.subf %76, %75 : vector<16x128xf32>
    %78 = math.exp %77 : vector<16x128xf32>
    %79 = math.log1p %78 : vector<16x128xf32>
    %80 = arith.addf %74, %79 : vector<16x128xf32>
    %81 = arith.mulf %72, %80 : vector<16x128xf32>
    %cst_44 = arith.constant dense<0.000000e+00> : vector<8x128xf32>
    %82 = tpu.matmul %13, %81, %cst_44 {dimension_numbers = #tpu.dot_dimension_numbers<[0], [0], [1], [1], [0, 1, 1, 1], [], []>} : vector<16x8xf32>, vector<16x128xf32>, vector<8x128xf32> -> vector<8x128xf32>
    %83 = arith.addf %82, %50 : vector<8x128xf32>
    %cst_45 = arith.constant 0.000000e+00 : f32
    %84 = vector.broadcast %cst_45 : f32 to vector<8x128xf32>
    %85 = arith.maximumf %83, %84 : vector<8x128xf32>
    %c0_46 = arith.constant 0 : index
    %c0_47 = arith.constant 0 : index
    %86 = vector.load %arg12[%c0_46, %c0_47] : memref<128x128xf32, #tpu.memory_space<vmem>>, vector<128x128xf32>
    %cst_48 = arith.constant dense<0.000000e+00> : vector<8x128xf32>
    %87 = tpu.matmul %85, %86, %cst_48 {dimension_numbers = #tpu.dot_dimension_numbers<[1], [0], [0], [1], [0, 0, 1, 1], [], []>} : vector<8x128xf32>, vector<128x128xf32>, vector<8x128xf32> -> vector<8x128xf32>
    %c0_49 = arith.constant 0 : index
    %c0_50 = arith.constant 0 : index
    %88 = vector.load %arg13[%c0_49, %c0_50] : memref<1x128xf32, #tpu.memory_space<vmem>>, vector<1x128xf32>
    %89 = vector.broadcast %88 : vector<1x128xf32> to vector<8x128xf32>
    %90 = arith.addf %87, %89 : vector<8x128xf32>
    %c0_51 = arith.constant 0 : index
    %c0_52 = arith.constant 0 : index
    %91 = vector.load %arg14[%c0_51, %c0_52] : memref<8x128xf32, #tpu.memory_space<vmem>>, vector<8x128xf32>
    tpu.vector_store %arg14[%c0_51, %c0_52], %90 {strides = array<i32>} : memref<8x128xf32, #tpu.memory_space<vmem>>, vector<8x128xf32>,
    return
  }
}

</mosaic_0001>

<llo_original>
// kernel: cgcnn_forward.1
$region0: #{cgcnn_forward.1}
  #allocation0 [shape = 'u32[]', space=smem, size = 0x4, offset = 0x4, fixed_abs, tag = 'smem constant byte address 0x4 - core index']
  #allocation1 [shape = 'u32[144,128]{1,0:T(1,128)}', space=vmem, size = 0x12000, scoped, tag = 'internal scratch']
  %s0 = inlined_call_operand.vmem [shape: f32[8,4], index: 0, kind: input, shape index: {}]
  %s1 = inlined_call_operand.vmem [shape: f32[16,6], index: 1, kind: input, shape index: {}]
  %s2 = inlined_call_operand.vmem [shape: bf16[16,8], index: 2, kind: input, shape index: {}]
  %s3 = inlined_call_operand.vmem [shape: bf16[16,8], index: 3, kind: input, shape index: {}]
  %s4 = inlined_call_operand.vmem [shape: f32[4,128], index: 4, kind: input, shape index: {}]
  %s5 = inlined_call_operand.vmem [shape: f32[1,128], index: 5, kind: input, shape index: {}]
  %s6 = inlined_call_operand.vmem [shape: f32[6,128], index: 6, kind: input, shape index: {}]
  %s7 = inlined_call_operand.vmem [shape: f32[1,128], index: 7, kind: input, shape index: {}]
  %s8 = inlined_call_operand.vmem [shape: f32[384,256], index: 8, kind: input, shape index: {}]
  %s9 = inlined_call_operand.vmem [shape: f32[1,256], index: 9, kind: input, shape index: {}]
  %s10 = inlined_call_operand.vmem [shape: f32[384,256], index: 10, kind: input, shape index: {}]
  %s11 = inlined_call_operand.vmem [shape: f32[1,256], index: 11, kind: input, shape index: {}]
  %s12 = inlined_call_operand.vmem [shape: f32[128,128], index: 12, kind: input, shape index: {}]
  %s13 = inlined_call_operand.vmem [shape: f32[1,128], index: 13, kind: input, shape index: {}]
  %s14 = inlined_call_operand.hbm [shape: f32[8,128], index: 14, kind: output, shape index: {}]
  %s15 = sld [smem:[#allocation0]]
  $region66: #{cgcnn_forward.1} parent=0
    _
  %s17 = ssub.s32 1, %s15
  %s18 = scalar_select 0, %s17, %s15
  $region1: #{cgcnn_forward.1} parent=0
    #allocation2 [shape = 'u8[4096]{0}', space=vmem, size = 0x1000, scoped, tag = 'output window, operand 0, single buffered']
    #allocation3 [shape = 's32[1]{0}', space=sflag, size = 0x4, scoped, tag = 'scoped memory for cgcnn_forward.1']
    %19 = vsyncpa [#allocation3], 0
    // Predicated region
    $region2: #{cgcnn_forward.1} parent=1 // pred_check
      _
    $region3: #{cgcnn_forward.1} parent=1 // pred_check_branch
      %21 = sbr.rel (0) target = $region5
    $region4: #{cgcnn_forward.1} parent=1 // pred_region
      _
    $region5: #{cgcnn_forward.1} parent=1 // pred_fallthru
      _
    // Predicated region
    $region6: #{cgcnn_forward.1} parent=1 // pred_check
      _
    $region7: #{cgcnn_forward.1} parent=1 // pred_check_branch
      %23 = sbr.rel (0) target = $region9
    $region8: #{cgcnn_forward.1} parent=1 // pred_region
      _
    $region9: #{cgcnn_forward.1} parent=1 // pred_fallthru
      _
    // Predicated region
    $region10: #{cgcnn_forward.1} parent=1 // pred_check
      _
    $region11: #{cgcnn_forward.1} parent=1 // pred_check_branch
      %25 = sbr.rel (0) target = $region13
    $region12: #{cgcnn_forward.1} parent=1 // pred_region
      _
    $region13: #{cgcnn_forward.1} parent=1 // pred_fallthru
      _
    // Predicated region
    $region14: #{cgcnn_forward.1} parent=1 // pred_check
      _
    $region15: #{cgcnn_forward.1} parent=1 // pred_check_branch
      %27 = sbr.rel (0) target = $region17
    $region16: #{cgcnn_forward.1} parent=1 // pred_region
      _
    $region17: #{cgcnn_forward.1} parent=1 // pred_fallthru
      _
    // Predicated region
    $region18: #{cgcnn_forward.1} parent=1 // pred_check
      _
    $region19: #{cgcnn_forward.1} parent=1 // pred_check_branch
      %29 = sbr.rel (0) target = $region21
    $region20: #{cgcnn_forward.1} parent=1 // pred_region
      _
    $region21: #{cgcnn_forward.1} parent=1 // pred_fallthru
      _
    // Predicated region
    $region22: #{cgcnn_forward.1} parent=1 // pred_check
      _
    $region23: #{cgcnn_forward.1} parent=1 // pred_check_branch
      %31 = sbr.rel (0) target = $region25
    $region24: #{cgcnn_forward.1} parent=1 // pred_region
      _
    $region25: #{cgcnn_forward.1} parent=1 // pred_fallthru
      _
    // Predicated region
    $region26: #{cgcnn_forward.1} parent=1 // pred_check
      _
    $region27: #{cgcnn_forward.1} parent=1 // pred_check_branch
      %33 = sbr.rel (0) target = $region29
    $region28: #{cgcnn_forward.1} parent=1 // pred_region
      _
    $region29: #{cgcnn_forward.1} parent=1 // pred_fallthru
      _
    // Predicated region
    $region30: #{cgcnn_forward.1} parent=1 // pred_check
      _
    $region31: #{cgcnn_forward.1} parent=1 // pred_check_branch
      %35 = sbr.rel (0) target = $region33
    $region32: #{cgcnn_forward.1} parent=1 // pred_region
      _
    $region33: #{cgcnn_forward.1} parent=1 // pred_fallthru
      _
    // Predicated region
    $region34: #{cgcnn_forward.1} parent=1 // pred_check
      _
    $region35: #{cgcnn_forward.1} parent=1 // pred_check_branch
      %37 = sbr.rel (0) target = $region37
    $region36: #{cgcnn_forward.1} parent=1 // pred_region
      _
    $region37: #{cgcnn_forward.1} parent=1 // pred_fallthru
      _
    // Predicated region
    $region38: #{cgcnn_forward.1} parent=1 // pred_check
      _
    $region39: #{cgcnn_forward.1} parent=1 // pred_check_branch
      %39 = sbr.rel (0) target = $region41
    $region40: #{cgcnn_forward.1} parent=1 // pred_region
      _
    $region41: #{cgcnn_forward.1} parent=1 // pred_fallthru
      _
    // Predicated region
    $region42: #{cgcnn_forward.1} parent=1 // pred_check
      _
    $region43: #{cgcnn_forward.1} parent=1 // pred_check_branch
      %41 = sbr.rel (0) target = $region45
    $region44: #{cgcnn_forward.1} parent=1 // pred_region
      _
    $region45: #{cgcnn_forward.1} parent=1 // pred_fallthru
      _
    // Predicated region
    $region46: #{cgcnn_forward.1} parent=1 // pred_check
      _
    $region47: #{cgcnn_forward.1} parent=1 // pred_check_branch
      %43 = sbr.rel (0) target = $region49
    $region48: #{cgcnn_forward.1} parent=1 // pred_region
      _
    $region49: #{cgcnn_forward.1} parent=1 // pred_fallthru
      _
    // Predicated region
    $region50: #{cgcnn_forward.1} parent=1 // pred_check
      _
    $region51: #{cgcnn_forward.1} parent=1 // pred_check_branch
      %45 = sbr.rel (0) target = $region53
    $region52: #{cgcnn_forward.1} parent=1 // pred_region
      _
    $region53: #{cgcnn_forward.1} parent=1 // pred_fallthru
      _
    // Predicated region
    $region54: #{cgcnn_forward.1} parent=1 // pred_check
      _
    $region55: #{cgcnn_forward.1} parent=1 // pred_check_branch
      %47 = sbr.rel (0) target = $region57
    $region56: #{cgcnn_forward.1} parent=1 // pred_region
      _
    $region57: #{cgcnn_forward.1} parent=1 // pred_fallthru
      _
    %v48 = vld [vmem:[%s0] sm:$0xff]
    %v49 = vld [vmem:[%s4] sm:$0xf]
    %v50 = vld [vmem:[%s5] sm:$0x1]
    %v52 = vlaneseq
    %v53 = vshrl.u32 %v52, 7
    %v54 = vsub.s32 0, %v53
    %v55 = vrot.slane %v50, %v54
    %vm57 = vcmask 31744
    %v59 = vsel %vm57, %v48, 0
    %vm61 = vcmask 1043456
    %v63 = vsel %vm61, %v49, 0
    %65 = vmatprep.subr.mxu0 0.0
    %66 = vmatpush1.msra.mxu0 %v63
    %67 = vmatprep.subr.mxu0 0.0
    %68 = vmatpush1.msra.mxu0 0.0
    %69 = vmatprep.subr.mxu0 0.0
    %70 = vmatpush1.msra.mxu0 0.0
    %71 = vmatprep.subr.mxu0 0.0
    %72 = vmatpush1.msra.mxu0 0.0
    %73 = vmatprep.subr.mxu0 0.0
    %74 = vmatpush1.msra.mxu0 0.0
    %75 = vmatprep.subr.mxu0 0.0
    %76 = vmatpush1.msra.mxu0 0.0
    %77 = vmatprep.subr.mxu0 0.0
    %78 = vmatpush1.msra.mxu0 0.0
    %79 = vmatprep.subr.mxu0 0.0
    %80 = vmatpush1.msra.mxu0 0.0
    %81 = vmatprep.subr.mxu0 0.0
    %82 = vmatpush1.msra.mxu0 0.0
    %83 = vmatprep.subr.mxu0 0.0
    %84 = vmatpush1.msra.mxu0 0.0
    %85 = vmatprep.subr.mxu0 0.0
    %86 = vmatpush1.msra.mxu0 0.0
    %87 = vmatprep.subr.mxu0 0.0
    %88 = vmatpush1.msra.mxu0 0.0
    %89 = vmatprep.subr.mxu0 0.0
    %90 = vmatpush1.msra.mxu0 0.0
    %91 = vmatprep.subr.mxu0 0.0
    %92 = vmatpush1.msra.mxu0 0.0
    %93 = vmatprep.subr.mxu0 0.0
    %94 = vmatpush1.msra.mxu0 0.0
    %95 = vmatprep.subr.mxu0 0.0
    %96 = vmatpush1.msra.mxu0 0.0
    %97 = vmatprep.subr.mxu0 0.0
    %98 = vmatpush1.msra.mxu0 0.0
    %99 = vmatprep.subr.mxu0 0.0
    %100 = vmatpush1.msra.mxu0 0.0
    %101 = vmatprep.subr.mxu0 0.0
    %102 = vmatpush1.msra.mxu0 0.0
    %103 = vmatprep.subr.mxu0 0.0
    %104 = vmatpush1.msra.mxu0 0.0
    %105 = vmatprep.subr.mxu0 0.0
    %106 = vmatpush1.msra.mxu0 0.0
    %107 = vmatprep.subr.mxu0 0.0
    %108 = vmatpush1.msra.mxu0 0.0
    %109 = vmatprep.subr.mxu0 0.0
    %110 = vmatpush1.msra.mxu0 0.0
    %111 = vmatprep.subr.mxu0 0.0
    %112 = vmatpush1.msra.mxu0 0.0
    %113 = vmatprep.subr.mxu0 0.0
    %114 = vmatpush1.msra.mxu0 0.0
    %115 = vmatprep.subr.mxu0 0.0
    %116 = vmatpush1.msra.mxu0 0.0
    %117 = vmatprep.subr.mxu0 0.0
    %118 = vmatpush1.msra.mxu0 0.0
    %119 = vmatprep.subr.mxu0 0.0
    %120 = vmatpush1.msra.mxu0 0.0
    %121 = vmatprep.subr.mxu0 0.0
    %122 = vmatpush1.msra.mxu0 0.0
    %123 = vmatprep.subr.mxu0 0.0
    %124 = vmatpush1.msra.mxu0 0.0
    %125 = vmatprep.subr.mxu0 0.0
    %126 = vmatpush1.msra.mxu0 0.0
    %127 = vmatprep.subr.mxu0 0.0
    %128 = vmatpush1.msra.mxu0 0.0
    %129 = vmatprep.mubr.f32.mxu0 0.0
    %130 = vmatmul.mubr.f32.gmra.mrb[0].mxu0 %v59
    %v131 = vpop.f32.mrb[0].mxu0
    %v132 = vadd.f32 %v55, %v131
    %v133 = vpop.f32.mrb[0].mxu0
    %134 = vdwg.mxu0
    %v135 = vld [vmem:[%s1] sm:$0xff]
    %v136 = vld [vmem:[%s1 + $0x8] sm:$0xff]
    %v137 = vld [vmem:[%s6] sm:$0x3f]
    %v138 = vld [vmem:[%s7] sm:$0x1]
    %v140 = vlaneseq
    %v141 = vshrl.u32 %v140, 7
    %v142 = vsub.s32 0, %v141
    %v143 = vrot.slane %v138, %v142
    %vm145 = vcmask 48128
    %v147 = vsel %vm145, %v135, 0
    %v150 = vsel %vm145, %v136, 0
    %vm152 = vcmask 1045504
    %v154 = vsel %vm152, %v137, 0
    %156 = vmatprep.subr.mxu0 0.0
    %157 = vmatpush1.msra.mxu0 %v154
    %158 = vmatprep.subr.mxu0 0.0
    %159 = vmatpush1.msra.mxu0 0.0
    %160 = vmatprep.subr.mxu0 0.0
    %161 = vmatpush1.msra.mxu0 0.0
    %162 = vmatprep.subr.mxu0 0.0
    %163 = vmatpush1.msra.mxu0 0.0
    %164 = vmatprep.subr.mxu0 0.0
    %165 = vmatpush1.msra.mxu0 0.0
    %166 = vmatprep.subr.mxu0 0.0
    %167 = vmatpush1.msra.mxu0 0.0
    %168 = vmatprep.subr.mxu0 0.0
    %169 = vmatpush1.msra.mxu0 0.0
    %170 = vmatprep.subr.mxu0 0.0
    %171 = vmatpush1.msra.mxu0 0.0
    %172 = vmatprep.subr.mxu0 0.0
    %173 = vmatpush1.msra.mxu0 0.0
    %174 = vmatprep.subr.mxu0 0.0
    %175 = vmatpush1.msra.mxu0 0.0
    %176 = vmatprep.subr.mxu0 0.0
    %177 = vmatpush1.msra.mxu0 0.0
    %178 = vmatprep.subr.mxu0 0.0
    %179 = vmatpush1.msra.mxu0 0.0
    %180 = vmatprep.subr.mxu0 0.0
    %181 = vmatpush1.msra.mxu0 0.0
    %182 = vmatprep.subr.mxu0 0.0
    %183 = vmatpush1.msra.mxu0 0.0
    %184 = vmatprep.subr.mxu0 0.0
    %185 = vmatpush1.msra.mxu0 0.0
    %186 = vmatprep.subr.mxu0 0.0
    %187 = vmatpush1.msra.mxu0 0.0
    %188 = vmatprep.subr.mxu0 0.0
    %189 = vmatpush1.msra.mxu0 0.0
    %190 = vmatprep.subr.mxu0 0.0
    %191 = vmatpush1.msra.mxu0 0.0
    %192 = vmatprep.subr.mxu0 0.0
    %193 = vmatpush1.msra.mxu0 0.0
    %194 = vmatprep.subr.mxu0 0.0
    %195 = vmatpush1.msra.mxu0 0.0
    %196 = vmatprep.subr.mxu0 0.0
    %197 = vmatpush1.msra.mxu0 0.0
    %198 = vmatprep.subr.mxu0 0.0
    %199 = vmatpush1.msra.mxu0 0.0
    %200 = vmatprep.subr.mxu0 0.0
    %201 = vmatpush1.msra.mxu0 0.0
    %202 = vmatprep.subr.mxu0 0.0
    %203 = vmatpush1.msra.mxu0 0.0
    %204 = vmatprep.subr.mxu0 0.0
    %205 = vmatpush1.msra.mxu0 0.0
    %206 = vmatprep.subr.mxu0 0.0
    %207 = vmatpush1.msra.mxu0 0.0
    %208 = vmatprep.subr.mxu0 0.0
    %209 = vmatpush1.msra.mxu0 0.0
    %210 = vmatprep.subr.mxu0 0.0
    %211 = vmatpush1.msra.mxu0 0.0
    %212 = vmatprep.subr.mxu0 0.0
    %213 = vmatpush1.msra.mxu0 0.0
    %214 = vmatprep.subr.mxu0 0.0
    %215 = vmatpush1.msra.mxu0 0.0
    %216 = vmatprep.subr.mxu0 0.0
    %217 = vmatpush1.msra.mxu0 0.0
    %218 = vmatprep.subr.mxu0 0.0
    %219 = vmatpush1.msra.mxu0 0.0
    %220 = vmatprep.mubr.f32.mxu0 0.0
    %221 = vmatmul.mubr.f32.gmra.mrb[0].mxu0 %v147
    %v222 = vpop.f32.mrb[0].mxu0
    %v223 = vadd.f32 %v143, %v222
    %v224 = vpop.f32.mrb[0].mxu0
    %225 = vmatprep.mubr.f32.mxu0 0.0
    %226 = vmatmul.mubr.f32.gmra.mrb[0].mxu0 %v150
    %v227 = vpop.f32.mrb[0].mxu0
    %v228 = vadd.f32 %v143, %v227
    %v229 = vpop.f32.mrb[0].mxu0
    %230 = vdwg.mxu0
    %v231 = vld [vmem:[%s2] sm:$0xf]
    %v232 = vld [vmem:[%s2 + $0x4] sm:$0xf]
    %v233 = vunpack.c.l.bf16 %v231
    %v234 = vunpack.c.l.bf16 %v232
    %v235 = vld [vmem:[%s3] sm:$0xf]
    %v236 = vld [vmem:[%s3 + $0x4] sm:$0xf]
    %v237 = vunpack.c.l.bf16 %v235
    %v238 = vunpack.c.l.bf16 %v236
    %vm239 = vcmask 64512
    %v241 = vsel %vm239, %v233, 0
    %v244 = vsel %vm239, %v234, 0
    %246 = vmatprep.subr.mxu0 0.0
    %247 = vmatpush1.msra.mxu0 %v132
    %248 = vmatprep.subr.mxu0 0.0
    %249 = vmatpush1.msra.mxu0 0.0
    %250 = vmatprep.subr.mxu0 0.0
    %251 = vmatpush1.msra.mxu0 0.0
    %252 = vmatprep.subr.mxu0 0.0
    %253 = vmatpush1.msra.mxu0 0.0
    %254 = vmatprep.subr.mxu0 0.0
    %255 = vmatpush1.msra.mxu0 0.0
    %256 = vmatprep.subr.mxu0 0.0
    %257 = vmatpush1.msra.mxu0 0.0
    %258 = vmatprep.subr.mxu0 0.0
    %259 = vmatpush1.msra.mxu0 0.0
    %260 = vmatprep.subr.mxu0 0.0
    %261 = vmatpush1.msra.mxu0 0.0
    %262 = vmatprep.subr.mxu0 0.0
    %263 = vmatpush1.msra.mxu0 0.0
    %264 = vmatprep.subr.mxu0 0.0
    %265 = vmatpush1.msra.mxu0 0.0
    %266 = vmatprep.subr.mxu0 0.0
    %267 = vmatpush1.msra.mxu0 0.0
    %268 = vmatprep.subr.mxu0 0.0
    %269 = vmatpush1.msra.mxu0 0.0
    %270 = vmatprep.subr.mxu0 0.0
    %271 = vmatpush1.msra.mxu0 0.0
    %272 = vmatprep.subr.mxu0 0.0
    %273 = vmatpush1.msra.mxu0 0.0
    %274 = vmatprep.subr.mxu0 0.0
    %275 = vmatpush1.msra.mxu0 0.0
    %276 = vmatprep.subr.mxu0 0.0
    %277 = vmatpush1.msra.mxu0 0.0
    %278 = vmatprep.subr.mxu0 0.0
    %279 = vmatpush1.msra.mxu0 0.0
    %280 = vmatprep.subr.mxu0 0.0
    %281 = vmatpush1.msra.mxu0 0.0
    %282 = vmatprep.subr.mxu0 0.0
    %283 = vmatpush1.msra.mxu0 0.0
    %284 = vmatprep.subr.mxu0 0.0
    %285 = vmatpush1.msra.mxu0 0.0
    %286 = vmatprep.subr.mxu0 0.0
    %287 = vmatpush1.msra.mxu0 0.0
    %288 = vmatprep.subr.mxu0 0.0
    %289 = vmatpush1.msra.mxu0 0.0
    %290 = vmatprep.subr.mxu0 0.0
    %291 = vmatpush1.msra.mxu0 0.0
    %292 = vmatprep.subr.mxu0 0.0
    %293 = vmatpush1.msra.mxu0 0.0
    %294 = vmatprep.subr.mxu0 0.0
    %295 = vmatpush1.msra.mxu0 0.0
    %296 = vmatprep.subr.mxu0 0.0
    %297 = vmatpush1.msra.mxu0 0.0
    %298 = vmatprep.subr.mxu0 0.0
    %299 = vmatpush1.msra.mxu0 0.0
    %300 = vmatprep.subr.mxu0 0.0
    %301 = vmatpush1.msra.mxu0 0.0
    %302 = vmatprep.subr.mxu0 0.0
    %303 = vmatpush1.msra.mxu0 0.0
    %304 = vmatprep.subr.mxu0 0.0
    %305 = vmatpush1.msra.mxu0 0.0
    %306 = vmatprep.subr.mxu0 0.0
    %307 = vmatpush1.msra.mxu0 0.0
    %308 = vmatprep.subr.mxu0 0.0
    %309 = vmatpush1.msra.mxu0 0.0
    %310 = vmatprep.mubr.f32.mxu0 0.0
    %311 = vmatmul.mubr.f32.gmra.mrb[0].mxu0 %v241
    %v312 = vpop.f32.mrb[0].mxu0
    %v313 = vadd.f32 0.0, %v312
    %v314 = vpop.f32.mrb[0].mxu0
    %315 = vmatprep.mubr.f32.mxu0 0.0
    %316 = vmatmul.mubr.f32.gmra.mrb[0].mxu0 %v244
    %v317 = vpop.f32.mrb[0].mxu0
    %v318 = vadd.f32 0.0, %v317
    %v319 = vpop.f32.mrb[0].mxu0
    %320 = vdwg.mxu0
    %v322 = vsel %vm239, %v237, 0
    %v325 = vsel %vm239, %v238, 0
    %327 = vmatprep.subr.mxu0 0.0
    %328 = vmatpush1.msra.mxu0 %v132
    %329 = vmatprep.subr.mxu0 0.0
    %330 = vmatpush1.msra.mxu0 0.0
    %331 = vmatprep.subr.mxu0 0.0
    %332 = vmatpush1.msra.mxu0 0.0
    %333 = vmatprep.subr.mxu0 0.0
    %334 = vmatpush1.msra.mxu0 0.0
    %335 = vmatprep.subr.mxu0 0.0
    %336 = vmatpush1.msra.mxu0 0.0
    %337 = vmatprep.subr.mxu0 0.0
    %338 = vmatpush1.msra.mxu0 0.0
    %339 = vmatprep.subr.mxu0 0.0
    %340 = vmatpush1.msra.mxu0 0.0
    %341 = vmatprep.subr.mxu0 0.0
    %342 = vmatpush1.msra.mxu0 0.0
    %343 = vmatprep.subr.mxu0 0.0
    %344 = vmatpush1.msra.mxu0 0.0
    %345 = vmatprep.subr.mxu0 0.0
    %346 = vmatpush1.msra.mxu0 0.0
    %347 = vmatprep.subr.mxu0 0.0
    %348 = vmatpush1.msra.mxu0 0.0
    %349 = vmatprep.subr.mxu0 0.0
    %350 = vmatpush1.msra.mxu0 0.0
    %351 = vmatprep.subr.mxu0 0.0
    %352 = vmatpush1.msra.mxu0 0.0
    %353 = vmatprep.subr.mxu0 0.0
    %354 = vmatpush1.msra.mxu0 0.0
    %355 = vmatprep.subr.mxu0 0.0
    %356 = vmatpush1.msra.mxu0 0.0
    %357 = vmatprep.subr.mxu0 0.0
    %358 = vmatpush1.msra.mxu0 0.0
    %359 = vmatprep.subr.mxu0 0.0
    %360 = vmatpush1.msra.mxu0 0.0
    %361 = vmatprep.subr.mxu0 0.0
    %362 = vmatpush1.msra.mxu0 0.0
    %363 = vmatprep.subr.mxu0 0.0
    %364 = vmatpush1.msra.mxu0 0.0
    %365 = vmatprep.subr.mxu0 0.0
    %366 = vmatpush1.msra.mxu0 0.0
    %367 = vmatprep.subr.mxu0 0.0
    %368 = vmatpush1.msra.mxu0 0.0
    %369 = vmatprep.subr.mxu0 0.0
    %370 = vmatpush1.msra.mxu0 0.0
    %371 = vmatprep.subr.mxu0 0.0
    %372 = vmatpush1.msra.mxu0 0.0
    %373 = vmatprep.subr.mxu0 0.0
    %374 = vmatpush1.msra.mxu0 0.0
    %375 = vmatprep.subr.mxu0 0.0
    %376 = vmatpush1.msra.mxu0 0.0
    %377 = vmatprep.subr.mxu0 0.0
    %378 = vmatpush1.msra.mxu0 0.0
    %379 = vmatprep.subr.mxu0 0.0
    %380 = vmatpush1.msra.mxu0 0.0
    %381 = vmatprep.subr.mxu0 0.0
    %382 = vmatpush1.msra.mxu0 0.0
    %383 = vmatprep.subr.mxu0 0.0
    %384 = vmatpush1.msra.mxu0 0.0
    %385 = vmatprep.subr.mxu0 0.0
    %386 = vmatpush1.msra.mxu0 0.0
    %387 = vmatprep.subr.mxu0 0.0
    %388 = vmatpush1.msra.mxu0 0.0
    %389 = vmatprep.subr.mxu0 0.0
    %390 = vmatpush1.msra.mxu0 0.0
    %391 = vmatprep.mubr.f32.mxu0 0.0
    %392 = vmatmul.mubr.f32.gmra.mrb[0].mxu0 %v322
    %v393 = vpop.f32.mrb[0].mxu0
    %v394 = vadd.f32 0.0, %v393
    %v395 = vpop.f32.mrb[0].mxu0
    %396 = vmatprep.mubr.f32.mxu0 0.0
    %397 = vmatmul.mubr.f32.gmra.mrb[0].mxu0 %v325
    %v398 = vpop.f32.mrb[0].mxu0
    %v399 = vadd.f32 0.0, %v398
    %v400 = vpop.f32.mrb[0].mxu0
    %401 = vdwg.mxu0
    %v402 = vld [vmem:[%s8] sm:$0xff]
    %v403 = vld [vmem:[%s8 + $0x8] sm:$0xff]
    %v404 = vld [vmem:[%s8 + $0x10] sm:$0xff]
    %v405 = vld [vmem:[%s8 + $0x18] sm:$0xff]
    %v406 = vld [vmem:[%s8 + $0x20] sm:$0xff]
    %v407 = vld [vmem:[%s8 + $0x28] sm:$0xff]
    %v408 = vld [vmem:[%s8 + $0x30] sm:$0xff]
    %v409 = vld [vmem:[%s8 + $0x38] sm:$0xff]
    %v410 = vld [vmem:[%s8 + $0x40] sm:$0xff]
    %v411 = vld [vmem:[%s8 + $0x48] sm:$0xff]
    %v412 = vld [vmem:[%s8 + $0x50] sm:$0xff]
    %v413 = vld [vmem:[%s8 + $0x58] sm:$0xff]
    %v414 = vld [vmem:[%s8 + $0x60] sm:$0xff]
    %v415 = vld [vmem:[%s8 + $0x68] sm:$0xff]
    %v416 = vld [vmem:[%s8 + $0x70] sm:$0xff]
    %v417 = vld [vmem:[%s8 + $0x78] sm:$0xff]
    %v418 = vld [vmem:[%s8 + $0x80] sm:$0xff]
    %v419 = vld [vmem:[%s8 + $0x88] sm:$0xff]
    %v420 = vld [vmem:[%s8 + $0x90] sm:$0xff]
    %v421 = vld [vmem:[%s8 + $0x98] sm:$0xff]
    %v422 = vld [vmem:[%s8 + $0xa0] sm:$0xff]
    %v423 = vld [vmem:[%s8 + $0xa8] sm:$0xff]
    %v424 = vld [vmem:[%s8 + $0xb0] sm:$0xff]
    %v425 = vld [vmem:[%s8 + $0xb8] sm:$0xff]
    %v426 = vld [vmem:[%s8 + $0xc0] sm:$0xff]
    %v427 = vld [vmem:[%s8 + $0xc8] sm:$0xff]
    %v428 = vld [vmem:[%s8 + $0xd0] sm:$0xff]
    %v429 = vld [vmem:[%s8 + $0xd8] sm:$0xff]
    %v430 = vld [vmem:[%s8 + $0xe0] sm:$0xff]
    %v431 = vld [vmem:[%s8 + $0xe8] sm:$0xff]
    %v432 = vld [vmem:[%s8 + $0xf0] sm:$0xff]
    %v433 = vld [vmem:[%s8 + $0xf8] sm:$0xff]
    %v434 = vld [vmem:[%s8 + $0x100] sm:$0xff]
    %v435 = vld [vmem:[%s8 + $0x108] sm:$0xff]
    %v436 = vld [vmem:[%s8 + $0x110] sm:$0xff]
    %v437 = vld [vmem:[%s8 + $0x118] sm:$0xff]
    %v438 = vld [vmem:[%s8 + $0x120] sm:$0xff]
    %v439 = vld [vmem:[%s8 + $0x128] sm:$0xff]
    %v440 = vld [vmem:[%s8 + $0x130] sm:$0xff]
    %v441 = vld [vmem:[%s8 + $0x138] sm:$0xff]
    %v442 = vld [vmem:[%s8 + $0x140] sm:$0xff]
    %v443 = vld [vmem:[%s8 + $0x148] sm:$0xff]
    %v444 = vld [vmem:[%s8 + $0x150] sm:$0xff]
    %v445 = vld [vmem:[%s8 + $0x158] sm:$0xff]
    %v446 = vld [vmem:[%s8 + $0x160] sm:$0xff]
    %v447 = vld [vmem:[%s8 + $0x168] sm:$0xff]
    %v448 = vld [vmem:[%s8 + $0x170] sm:$0xff]
    %v449 = vld [vmem:[%s8 + $0x178] sm:$0xff]
    %v450 = vld [vmem:[%s8 + $0x180] sm:$0xff]
    %v451 = vld [vmem:[%s8 + $0x188] sm:$0xff]
    %v452 = vld [vmem:[%s8 + $0x190] sm:$0xff]
    %v453 = vld [vmem:[%s8 + $0x198] sm:$0xff]
    %v454 = vld [vmem:[%s8 + $0x1a0] sm:$0xff]
    %v455 = vld [vmem:[%s8 + $0x1a8] sm:$0xff]
    %v456 = vld [vmem:[%s8 + $0x1b0] sm:$0xff]
    %v457 = vld [vmem:[%s8 + $0x1b8] sm:$0xff]
    %v458 = vld [vmem:[%s8 + $0x1c0] sm:$0xff]
    %v459 = vld [vmem:[%s8 + $0x1c8] sm:$0xff]
    %v460 = vld [vmem:[%s8 + $0x1d0] sm:$0xff]
    %v461 = vld [vmem:[%s8 + $0x1d8] sm:$0xff]
    %v462 = vld [vmem:[%s8 + $0x1e0] sm:$0xff]
    %v463 = vld [vmem:[%s8 + $0x1e8] sm:$0xff]
    %v464 = vld [vmem:[%s8 + $0x1f0] sm:$0xff]
    %v465 = vld [vmem:[%s8 + $0x1f8] sm:$0xff]
    %v466 = vld [vmem:[%s8 + $0x200] sm:$0xff]
    %v467 = vld [vmem:[%s8 + $0x208] sm:$0xff]
    %v468 = vld [vmem:[%s8 + $0x210] sm:$0xff]
    %v469 = vld [vmem:[%s8 + $0x218] sm:$0xff]
    %v470 = vld [vmem:[%s8 + $0x220] sm:$0xff]
    %v471 = vld [vmem:[%s8 + $0x228] sm:$0xff]
    %v472 = vld [vmem:[%s8 + $0x230] sm:$0xff]
    %v473 = vld [vmem:[%s8 + $0x238] sm:$0xff]
    %v474 = vld [vmem:[%s8 + $0x240] sm:$0xff]
    %v475 = vld [vmem:[%s8 + $0x248] sm:$0xff]
    %v476 = vld [vmem:[%s8 + $0x250] sm:$0xff]
    %v477 = vld [vmem:[%s8 + $0x258] sm:$0xff]
    %v478 = vld [vmem:[%s8 + $0x260] sm:$0xff]
    %v479 = vld [vmem:[%s8 + $0x268] sm:$0xff]
    %v480 = vld [vmem:[%s8 + $0x270] sm:$0xff]
    %v481 = vld [vmem:[%s8 + $0x278] sm:$0xff]
    %v482 = vld [vmem:[%s8 + $0x280] sm:$0xff]
    %v483 = vld [vmem:[%s8 + $0x288] sm:$0xff]
    %v484 = vld [vmem:[%s8 + $0x290] sm:$0xff]
    %v485 = vld [vmem:[%s8 + $0x298] sm:$0xff]
    %v486 = vld [vmem:[%s8 + $0x2a0] sm:$0xff]
    %v487 = vld [vmem:[%s8 + $0x2a8] sm:$0xff]
    %v488 = vld [vmem:[%s8 + $0x2b0] sm:$0xff]
    %v489 = vld [vmem:[%s8 + $0x2b8] sm:$0xff]
    %v490 = vld [vmem:[%s8 + $0x2c0] sm:$0xff]
    %v491 = vld [vmem:[%s8 + $0x2c8] sm:$0xff]
    %v492 = vld [vmem:[%s8 + $0x2d0] sm:$0xff]
    %v493 = vld [vmem:[%s8 + $0x2d8] sm:$0xff]
    %v494 = vld [vmem:[%s8 + $0x2e0] sm:$0xff]
    %v495 = vld [vmem:[%s8 + $0x2e8] sm:$0xff]
    %v496 = vld [vmem:[%s8 + $0x2f0] sm:$0xff]
    %v497 = vld [vmem:[%s8 + $0x2f8] sm:$0xff]
    %498 = vmatprep.subr.mxu0 %v435
    %499 = vmatpush1.msra.mxu0 %v434
    %500 = vmatprep.subr.mxu0 %v437
    %501 = vmatpush1.msra.mxu0 %v436
    %502 = vmatprep.subr.mxu0 %v439
    %503 = vmatpush1.msra.mxu0 %v438
    %504 = vmatprep.subr.mxu0 %v441
    %505 = vmatpush1.msra.mxu0 %v440
    %506 = vmatprep.subr.mxu0 %v443
    %507 = vmatpush1.msra.mxu0 %v442
    %508 = vmatprep.subr.mxu0 %v445
    %509 = vmatpush1.msra.mxu0 %v444
    %510 = vmatprep.subr.mxu0 %v447
    %511 = vmatpush1.msra.mxu0 %v446
    %512 = vmatprep.subr.mxu0 %v449
    %513 = vmatpush1.msra.mxu0 %v448
    %514 = vmatprep.subr.mxu0 %v451
    %515 = vmatpush1.msra.mxu0 %v450
    %516 = vmatprep.subr.mxu0 %v453
    %517 = vmatpush1.msra.mxu0 %v452
    %518 = vmatprep.subr.mxu0 %v455
    %519 = vmatpush1.msra.mxu0 %v454
    %520 = vmatprep.subr.mxu0 %v457
    %521 = vmatpush1.msra.mxu0 %v456
    %522 = vmatprep.subr.mxu0 %v459
    %523 = vmatpush1.msra.mxu0 %v458
    %524 = vmatprep.subr.mxu0 %v461
    %525 = vmatpush1.msra.mxu0 %v460
    %526 = vmatprep.subr.mxu0 %v463
    %527 = vmatpush1.msra.mxu0 %v462
    %528 = vmatprep.subr.mxu0 %v465
    %529 = vmatpush1.msra.mxu0 %v464
    %530 = vmatprep.subr.mxu0 0.0
    %531 = vmatpush1.msra.mxu0 0.0
    %532 = vmatprep.subr.mxu0 0.0
    %533 = vmatpush1.msra.mxu0 0.0
    %534 = vmatprep.subr.mxu0 0.0
    %535 = vmatpush1.msra.mxu0 0.0
    %536 = vmatprep.subr.mxu0 0.0
    %537 = vmatpush1.msra.mxu0 0.0
    %538 = vmatprep.subr.mxu0 0.0
    %539 = vmatpush1.msra.mxu0 0.0
    %540 = vmatprep.subr.mxu0 0.0
    %541 = vmatpush1.msra.mxu0 0.0
    %542 = vmatprep.subr.mxu0 0.0
    %543 = vmatpush1.msra.mxu0 0.0
    %544 = vmatprep.subr.mxu0 0.0
    %545 = vmatpush1.msra.mxu0 0.0
    %546 = vmatprep.subr.mxu0 0.0
    %547 = vmatpush1.msra.mxu0 0.0
    %548 = vmatprep.subr.mxu0 0.0
    %549 = vmatpush1.msra.mxu0 0.0
    %550 = vmatprep.subr.mxu0 0.0
    %551 = vmatpush1.msra.mxu0 0.0
    %552 = vmatprep.subr.mxu0 0.0
    %553 = vmatpush1.msra.mxu0 0.0
    %554 = vmatprep.subr.mxu0 0.0
    %555 = vmatpush1.msra.mxu0 0.0
    %556 = vmatprep.subr.mxu0 0.0
    %557 = vmatpush1.msra.mxu0 0.0
    %558 = vmatprep.subr.mxu0 0.0
    %559 = vmatpush1.msra.mxu0 0.0
    %560 = vmatprep.subr.mxu0 0.0
    %561 = vmatpush1.msra.mxu0 0.0
    %562 = vmatprep.mubr.f32.mxu0 0.0
    %563 = vmatmul.mubr.f32.gmra.mrb[0].mxu0 %v394
    %v564 = vpop.f32.mrb[0].mxu0
    %v565 = vadd.f32 0.0, %v564
    %v566 = vpop.f32.mrb[0].mxu0
    %v567 = vadd.f32 0.0, %v566
    %568 = vmatprep.mubr.f32.mxu0 0.0
    %569 = vmatmul.mubr.f32.gmra.mrb[0].mxu0 %v399
    %v570 = vpop.f32.mrb[0].mxu0
    %v571 = vadd.f32 0.0, %v570
    %v572 = vpop.f32.mrb[0].mxu0
    %v573 = vadd.f32 0.0, %v572
    %574 = vdwg.mxu0
    %575 = vmatprep.subr.mxu0 %v403
    %576 = vmatpush1.msra.mxu0 %v402
    %577 = vmatprep.subr.mxu0 %v405
    %578 = vmatpush1.msra.mxu0 %v404
    %579 = vmatprep.subr.mxu0 %v407
    %580 = vmatpush1.msra.mxu0 %v406
    %581 = vmatprep.subr.mxu0 %v409
    %582 = vmatpush1.msra.mxu0 %v408
    %583 = vmatprep.subr.mxu0 %v411
    %584 = vmatpush1.msra.mxu0 %v410
    %585 = vmatprep.subr.mxu0 %v413
    %586 = vmatpush1.msra.mxu0 %v412
    %587 = vmatprep.subr.mxu0 %v415
    %588 = vmatpush1.msra.mxu0 %v414
    %589 = vmatprep.subr.mxu0 %v417
    %590 = vmatpush1.msra.mxu0 %v416
    %591 = vmatprep.subr.mxu0 %v419
    %592 = vmatpush1.msra.mxu0 %v418
    %593 = vmatprep.subr.mxu0 %v421
    %594 = vmatpush1.msra.mxu0 %v420
    %595 = vmatprep.subr.mxu0 %v423
    %596 = vmatpush1.msra.mxu0 %v422
    %597 = vmatprep.subr.mxu0 %v425
    %598 = vmatpush1.msra.mxu0 %v424
    %599 = vmatprep.subr.mxu0 %v427
    %600 = vmatpush1.msra.mxu0 %v426
    %601 = vmatprep.subr.mxu0 %v429
    %602 = vmatpush1.msra.mxu0 %v428
    %603 = vmatprep.subr.mxu0 %v431
    %604 = vmatpush1.msra.mxu0 %v430
    %605 = vmatprep.subr.mxu0 %v433
    %606 = vmatpush1.msra.mxu0 %v432
    %607 = vmatprep.subr.mxu0 0.0
    %608 = vmatpush1.msra.mxu0 0.0
    %609 = vmatprep.subr.mxu0 0.0
    %610 = vmatpush1.msra.mxu0 0.0
    %611 = vmatprep.subr.mxu0 0.0
    %612 = vmatpush1.msra.mxu0 0.0
    %613 = vmatprep.subr.mxu0 0.0
    %614 = vmatpush1.msra.mxu0 0.0
    %615 = vmatprep.subr.mxu0 0.0
    %616 = vmatpush1.msra.mxu0 0.0
    %617 = vmatprep.subr.mxu0 0.0
    %618 = vmatpush1.msra.mxu0 0.0
    %619 = vmatprep.subr.mxu0 0.0
    %620 = vmatpush1.msra.mxu0 0.0
    %621 = vmatprep.subr.mxu0 0.0
    %622 = vmatpush1.msra.mxu0 0.0
    %623 = vmatprep.subr.mxu0 0.0
    %624 = vmatpush1.msra.mxu0 0.0
    %625 = vmatprep.subr.mxu0 0.0
    %626 = vmatpush1.msra.mxu0 0.0
    %627 = vmatprep.subr.mxu0 0.0
    %628 = vmatpush1.msra.mxu0 0.0
    %629 = vmatprep.subr.mxu0 0.0
    %630 = vmatpush1.msra.mxu0 0.0
    %631 = vmatprep.subr.mxu0 0.0
    %632 = vmatpush1.msra.mxu0 0.0
    %633 = vmatprep.subr.mxu0 0.0
    %634 = vmatpush1.msra.mxu0 0.0
    %635 = vmatprep.subr.mxu0 0.0
    %636 = vmatpush1.msra.mxu0 0.0
    %637 = vmatprep.subr.mxu0 0.0
    %638 = vmatpush1.msra.mxu0 0.0
    %639 = vmatprep.mubr.f32.mxu0 0.0
    %640 = vmatmul.mubr.f32.gmra.mrb[0].mxu0 %v313
    %v641 = vpop.f32.mrb[0].mxu0
    %v642 = vadd.f32 %v565, %v641
    %v643 = vpop.f32.mrb[0].mxu0
    %v644 = vadd.f32 %v567, %v643
    %645 = vmatprep.mubr.f32.mxu0 0.0
    %646 = vmatmul.mubr.f32.gmra.mrb[0].mxu0 %v318
    %v647 = vpop.f32.mrb[0].mxu0
    %v648 = vadd.f32 %v571, %v647
    %v649 = vpop.f32.mrb[0].mxu0
    %v650 = vadd.f32 %v573, %v649
    %651 = vdwg.mxu0
    %652 = vmatprep.subr.mxu0 %v467
    %653 = vmatpush1.msra.mxu0 %v466
    %654 = vmatprep.subr.mxu0 %v469
    %655 = vmatpush1.msra.mxu0 %v468
    %656 = vmatprep.subr.mxu0 %v471
    %657 = vmatpush1.msra.mxu0 %v470
    %658 = vmatprep.subr.mxu0 %v473
    %659 = vmatpush1.msra.mxu0 %v472
    %660 = vmatprep.subr.mxu0 %v475
    %661 = vmatpush1.msra.mxu0 %v474
    %662 = vmatprep.subr.mxu0 %v477
    %663 = vmatpush1.msra.mxu0 %v476
    %664 = vmatprep.subr.mxu0 %v479
    %665 = vmatpush1.msra.mxu0 %v478
    %666 = vmatprep.subr.mxu0 %v481
    %667 = vmatpush1.msra.mxu0 %v480
    %668 = vmatprep.subr.mxu0 %v483
    %669 = vmatpush1.msra.mxu0 %v482
    %670 = vmatprep.subr.mxu0 %v485
    %671 = vmatpush1.msra.mxu0 %v484
    %672 = vmatprep.subr.mxu0 %v487
    %673 = vmatpush1.msra.mxu0 %v486
    %674 = vmatprep.subr.mxu0 %v489
    %675 = vmatpush1.msra.mxu0 %v488
    %676 = vmatprep.subr.mxu0 %v491
    %677 = vmatpush1.msra.mxu0 %v490
    %678 = vmatprep.subr.mxu0 %v493
    %679 = vmatpush1.msra.mxu0 %v492
    %680 = vmatprep.subr.mxu0 %v495
    %681 = vmatpush1.msra.mxu0 %v494
    %682 = vmatprep.subr.mxu0 %v497
    %683 = vmatpush1.msra.mxu0 %v496
    %684 = vmatprep.subr.mxu0 0.0
    %685 = vmatpush1.msra.mxu0 0.0
    %686 = vmatprep.subr.mxu0 0.0
    %687 = vmatpush1.msra.mxu0 0.0
    %688 = vmatprep.subr.mxu0 0.0
    %689 = vmatpush1.msra.mxu0 0.0
    %690 = vmatprep.subr.mxu0 0.0
    %691 = vmatpush1.msra.mxu0 0.0
    %692 = vmatprep.subr.mxu0 0.0
    %693 = vmatpush1.msra.mxu0 0.0
    %694 = vmatprep.subr.mxu0 0.0
    %695 = vmatpush1.msra.mxu0 0.0
    %696 = vmatprep.subr.mxu0 0.0
    %697 = vmatpush1.msra.mxu0 0.0
    %698 = vmatprep.subr.mxu0 0.0
    %699 = vmatpush1.msra.mxu0 0.0
    %700 = vmatprep.subr.mxu0 0.0
    %701 = vmatpush1.msra.mxu0 0.0
    %702 = vmatprep.subr.mxu0 0.0
    %703 = vmatpush1.msra.mxu0 0.0
    %704 = vmatprep.subr.mxu0 0.0
    %705 = vmatpush1.msra.mxu0 0.0
    %706 = vmatprep.subr.mxu0 0.0
    %707 = vmatpush1.msra.mxu0 0.0
    %708 = vmatprep.subr.mxu0 0.0
    %709 = vmatpush1.msra.mxu0 0.0
    %710 = vmatprep.subr.mxu0 0.0
    %711 = vmatpush1.msra.mxu0 0.0
    %712 = vmatprep.subr.mxu0 0.0
    %713 = vmatpush1.msra.mxu0 0.0
    %714 = vmatprep.subr.mxu0 0.0
    %715 = vmatpush1.msra.mxu0 0.0
    %716 = vmatprep.mubr.f32.mxu0 0.0
    %717 = vmatmul.mubr.f32.gmra.mrb[0].mxu0 %v223
    %v718 = vpop.f32.mrb[0].mxu0
    %v719 = vadd.f32 0.0, %v718
    %v720 = vpop.f32.mrb[0].mxu0
    %v721 = vadd.f32 0.0, %v720
    %722 = vmatprep.mubr.f32.mxu0 0.0
    %723 = vmatmul.mubr.f32.gmra.mrb[0].mxu0 %v228
    %v724 = vpop.f32.mrb[0].mxu0
    %v725 = vadd.f32 0.0, %v724
    %v726 = vpop.f32.mrb[0].mxu0
    %v727 = vadd.f32 0.0, %v726
    %728 = vdwg.mxu0
    %v729 = vadd.f32 %v642, %v719
    %v730 = vadd.f32 %v644, %v721
    %v731 = vadd.f32 %v648, %v725
    %v732 = vadd.f32 %v650, %v727
    %v733 = vld [vmem:[%s9] sm:$0x3]
    %v735 = vlaneseq
    %v736 = vshrl.u32 %v735, 7
    %v737 = vsub.s32 0, %v736
    %v738 = vrot.slane %v733, %v737
    %v739 = vlaneseq
    %v740 = vshrl.u32 %v739, 7
    %v741 = vsub.s32 1, %v740
    %v742 = vrot.slane %v733, %v741
    %v745 = vadd.f32 %v729, %v738
    %v746 = vadd.f32 %v730, %v742
    %v747 = vadd.f32 %v731, %v738
    %v748 = vadd.f32 %v732, %v742
    %v749 = vsub.f32 0.0, %v745
    %v750 = vsub.f32 0.0, %v747
    %v751 = vmul.f32 %v749, 1.442695
    %v752 = vpow.pop %v751
    %v753 = vmul.f32 %v750, 1.442695
    %v754 = vpow.pop %v753
    %v755 = vadd.f32 %v752, 1.0
    %v756 = vadd.f32 %v754, 1.0
    %v757 = vrcp.pop %v755
    %v758 = vrcp.pop %v756
    %v759 = vmax.f32 %v746, 0.0
    %v760 = vmax.f32 %v748, 0.0
    %v761 = vand.u32 2147483647, %v746
    %v762 = vand.u32 2147483647, %v748
    %v763 = vsub.f32 0.0, %v761
    %v764 = vsub.f32 0.0, %v762
    %v765 = vmul.f32 %v763, 1.442695
    %v766 = vpow.pop %v765
    %v767 = vmul.f32 %v764, 1.442695
    %v768 = vpow.pop %v767
    %v769 = vadd.f32 %v766, 1.0
    %v770 = vlog2.pop %v769
    %v771 = vmul.f32 %v770, 0.6931472
    %v772 = vmul.f32 -0.5, %v766
    %v773 = vadd.f32 %v772, 1.0
    %v774 = vmul.f32 %v773, %v766
    %v775 = vand.u32 2147483647, %v766
    %vm776 = vcmp.lt.f32.partialorder %v775, 0.0004427343
    %v777 = vsel %vm776, %v774, %v771
    %v778 = vadd.f32 %v768, 1.0
    %v779 = vlog2.pop %v778
    %v780 = vmul.f32 %v779, 0.6931472
    %v781 = vmul.f32 -0.5, %v768
    %v782 = vadd.f32 %v781, 1.0
    %v783 = vmul.f32 %v782, %v768
    %v784 = vand.u32 2147483647, %v768
    %vm785 = vcmp.lt.f32.partialorder %v784, 0.0004427343
    %v786 = vsel %vm785, %v783, %v780
    %v787 = vadd.f32 %v759, %v777
    %v788 = vadd.f32 %v760, %v786
    %v789 = vmul.f32 %v757, %v787
    %v790 = vmul.f32 %v758, %v788
    %791 = vxpose.xlu0.b32.start [1/16] %v233, 128
    %792 = vxpose.xlu0.b32.cont [2/16] %v234, 128
    %793 = vxpose.xlu0.b32.cont [3/16] 0.0, 128
    %794 = vxpose.xlu0.b32.cont [4/16] 0.0, 128
    %795 = vxpose.xlu0.b32.cont [5/16] 0.0, 128
    %796 = vxpose.xlu0.b32.cont [6/16] 0.0, 128
    %797 = vxpose.xlu0.b32.cont [7/16] 0.0, 128
    %798 = vxpose.xlu0.b32.cont [8/16] 0.0, 128
    %799 = vxpose.xlu0.b32.cont [9/16] 0.0, 128
    %800 = vxpose.xlu0.b32.cont [10/16] 0.0, 128
    %801 = vxpose.xlu0.b32.cont [11/16] 0.0, 128
    %802 = vxpose.xlu0.b32.cont [12/16] 0.0, 128
    %803 = vxpose.xlu0.b32.cont [13/16] 0.0, 128
    %804 = vxpose.xlu0.b32.cont [14/16] 0.0, 128
    %805 = vxpose.xlu0.b32.cont [15/16] 0.0, 128
    %806 = vxpose.xlu0.b32.end [16/16] 0.0, 128
    %v807 = vpop.trf.xlu0
    %v808 = vpop.trf.xlu0
    %v809 = vpop.trf.xlu0
    %v810 = vpop.trf.xlu0
    %v811 = vpop.trf.xlu0
    %v812 = vpop.trf.xlu0
    %v813 = vpop.trf.xlu0
    %v814 = vpop.trf.xlu0
    %v815 = vpop.trf.xlu0
    %v816 = vpop.trf.xlu0
    %v817 = vpop.trf.xlu0
    %v818 = vpop.trf.xlu0
    %v819 = vpop.trf.xlu0
    %v820 = vpop.trf.xlu0
    %v821 = vpop.trf.xlu0
    %v822 = vpop.trf.xlu0
    %vm823 = vcmask 130048
    %v825 = vsel %vm823, %v807, 0
    %827 = vmatprep.subr.mxu0 0.0
    %828 = vmatpush1.msra.mxu0 %v789
    %829 = vmatprep.subr.mxu0 0.0
    %830 = vmatpush1.msra.mxu0 %v790
    %831 = vmatprep.subr.mxu0 0.0
    %832 = vmatpush1.msra.mxu0 0.0
    %833 = vmatprep.subr.mxu0 0.0
    %834 = vmatpush1.msra.mxu0 0.0
    %835 = vmatprep.subr.mxu0 0.0
    %836 = vmatpush1.msra.mxu0 0.0
    %837 = vmatprep.subr.mxu0 0.0
    %838 = vmatpush1.msra.mxu0 0.0
    %839 = vmatprep.subr.mxu0 0.0
    %840 = vmatpush1.msra.mxu0 0.0
    %841 = vmatprep.subr.mxu0 0.0
    %842 = vmatpush1.msra.mxu0 0.0
    %843 = vmatprep.subr.mxu0 0.0
    %844 = vmatpush1.msra.mxu0 0.0
    %845 = vmatprep.subr.mxu0 0.0
    %846 = vmatpush1.msra.mxu0 0.0
    %847 = vmatprep.subr.mxu0 0.0
    %848 = vmatpush1.msra.mxu0 0.0
    %849 = vmatprep.subr.mxu0 0.0
    %850 = vmatpush1.msra.mxu0 0.0
    %851 = vmatprep.subr.mxu0 0.0
    %852 = vmatpush1.msra.mxu0 0.0
    %853 = vmatprep.subr.mxu0 0.0
    %854 = vmatpush1.msra.mxu0 0.0
    %855 = vmatprep.subr.mxu0 0.0
    %856 = vmatpush1.msra.mxu0 0.0
    %857 = vmatprep.subr.mxu0 0.0
    %858 = vmatpush1.msra.mxu0 0.0
    %859 = vmatprep.subr.mxu0 0.0
    %860 = vmatpush1.msra.mxu0 0.0
    %861 = vmatprep.subr.mxu0 0.0
    %862 = vmatpush1.msra.mxu0 0.0
    %863 = vmatprep.subr.mxu0 0.0
    %864 = vmatpush1.msra.mxu0 0.0
    %865 = vmatprep.subr.mxu0 0.0
    %866 = vmatpush1.msra.mxu0 0.0
    %867 = vmatprep.subr.mxu0 0.0
    %868 = vmatpush1.msra.mxu0 0.0
    %869 = vmatprep.subr.mxu0 0.0
    %870 = vmatpush1.msra.mxu0 0.0
    %871 = vmatprep.subr.mxu0 0.0
    %872 = vmatpush1.msra.mxu0 0.0
    %873 = vmatprep.subr.mxu0 0.0
    %874 = vmatpush1.msra.mxu0 0.0
    %875 = vmatprep.subr.mxu0 0.0
    %876 = vmatpush1.msra.mxu0 0.0
    %877 = vmatprep.subr.mxu0 0.0
    %878 = vmatpush1.msra.mxu0 0.0
    %879 = vmatprep.subr.mxu0 0.0
    %880 = vmatpush1.msra.mxu0 0.0
    %881 = vmatprep.subr.mxu0 0.0
    %882 = vmatpush1.msra.mxu0 0.0
    %883 = vmatprep.subr.mxu0 0.0
    %884 = vmatpush1.msra.mxu0 0.0
    %885 = vmatprep.subr.mxu0 0.0
    %886 = vmatpush1.msra.mxu0 0.0
    %887 = vmatprep.subr.mxu0 0.0
    %888 = vmatpush1.msra.mxu0 0.0
    %889 = vmatprep.subr.mxu0 0.0
    %890 = vmatpush1.msra.mxu0 0.0
    %891 = vmatprep.mubr.f32.mxu0 0.0
    %892 = vmatmul.mubr.f32.gmra.mrb[0].mxu0 %v825
    %v893 = vpop.f32.mrb[0].mxu0
    %v894 = vadd.f32 %v132, %v893
    %v895 = vpop.f32.mrb[0].mxu0
    %896 = vdwg.mxu0
    %v897 = vmax.f32 %v894, 0.0
    %898 = vmatprep.subr.mxu0 0.0
    %899 = vmatpush1.msra.mxu0 %v897
    %900 = vmatprep.subr.mxu0 0.0
    %901 = vmatpush1.msra.mxu0 0.0
    %902 = vmatprep.subr.mxu0 0.0
    %903 = vmatpush1.msra.mxu0 0.0
    %904 = vmatprep.subr.mxu0 0.0
    %905 = vmatpush1.msra.mxu0 0.0
    %906 = vmatprep.subr.mxu0 0.0
    %907 = vmatpush1.msra.mxu0 0.0
    %908 = vmatprep.subr.mxu0 0.0
    %909 = vmatpush1.msra.mxu0 0.0
    %910 = vmatprep.subr.mxu0 0.0
    %911 = vmatpush1.msra.mxu0 0.0
    %912 = vmatprep.subr.mxu0 0.0
    %913 = vmatpush1.msra.mxu0 0.0
    %914 = vmatprep.subr.mxu0 0.0
    %915 = vmatpush1.msra.mxu0 0.0
    %916 = vmatprep.subr.mxu0 0.0
    %917 = vmatpush1.msra.mxu0 0.0
    %918 = vmatprep.subr.mxu0 0.0
    %919 = vmatpush1.msra.mxu0 0.0
    %920 = vmatprep.subr.mxu0 0.0
    %921 = vmatpush1.msra.mxu0 0.0
    %922 = vmatprep.subr.mxu0 0.0
    %923 = vmatpush1.msra.mxu0 0.0
    %924 = vmatprep.subr.mxu0 0.0
    %925 = vmatpush1.msra.mxu0 0.0
    %926 = vmatprep.subr.mxu0 0.0
    %927 = vmatpush1.msra.mxu0 0.0
    %928 = vmatprep.subr.mxu0 0.0
    %929 = vmatpush1.msra.mxu0 0.0
    %930 = vmatprep.subr.mxu0 0.0
    %931 = vmatpush1.msra.mxu0 0.0
    %932 = vmatprep.subr.mxu0 0.0
    %933 = vmatpush1.msra.mxu0 0.0
    %934 = vmatprep.subr.mxu0 0.0
    %935 = vmatpush1.msra.mxu0 0.0
    %936 = vmatprep.subr.mxu0 0.0
    %937 = vmatpush1.msra.mxu0 0.0
    %938 = vmatprep.subr.mxu0 0.0
    %939 = vmatpush1.msra.mxu0 0.0
    %940 = vmatprep.subr.mxu0 0.0
    %941 = vmatpush1.msra.mxu0 0.0
    %942 = vmatprep.subr.mxu0 0.0
    %943 = vmatpush1.msra.mxu0 0.0
    %944 = vmatprep.subr.mxu0 0.0
    %945 = vmatpush1.msra.mxu0 0.0
    %946 = vmatprep.subr.mxu0 0.0
    %947 = vmatpush1.msra.mxu0 0.0
    %948 = vmatprep.subr.mxu0 0.0
    %949 = vmatpush1.msra.mxu0 0.0
    %950 = vmatprep.subr.mxu0 0.0
    %951 = vmatpush1.msra.mxu0 0.0
    %952 = vmatprep.subr.mxu0 0.0
    %953 = vmatpush1.msra.mxu0 0.0
    %954 = vmatprep.subr.mxu0 0.0
    %955 = vmatpush1.msra.mxu0 0.0
    %956 = vmatprep.subr.mxu0 0.0
    %957 = vmatpush1.msra.mxu0 0.0
    %958 = vmatprep.subr.mxu0 0.0
    %959 = vmatpush1.msra.mxu0 0.0
    %960 = vmatprep.subr.mxu0 0.0
    %961 = vmatpush1.msra.mxu0 0.0
    %962 = vmatprep.mubr.f32.mxu0 0.0
    %963 = vmatmul.mubr.f32.gmra.mrb[0].mxu0 %v241
    %v964 = vpop.f32.mrb[0].mxu0
    %v965 = vadd.f32 0.0, %v964
    %v966 = vpop.f32.mrb[0].mxu0
    %967 = vmatprep.mubr.f32.mxu0 0.0
    %968 = vmatmul.mubr.f32.gmra.mrb[0].mxu0 %v244
    %v969 = vpop.f32.mrb[0].mxu0
    %v970 = vadd.f32 0.0, %v969
    %v971 = vpop.f32.mrb[0].mxu0
    %972 = vdwg.mxu0
    %973 = vmatprep.subr.mxu0 0.0
    %974 = vmatpush1.msra.mxu0 %v897
    %975 = vmatprep.subr.mxu0 0.0
    %976 = vmatpush1.msra.mxu0 0.0
    %977 = vmatprep.subr.mxu0 0.0
    %978 = vmatpush1.msra.mxu0 0.0
    %979 = vmatprep.subr.mxu0 0.0
    %980 = vmatpush1.msra.mxu0 0.0
    %981 = vmatprep.subr.mxu0 0.0
    %982 = vmatpush1.msra.mxu0 0.0
    %983 = vmatprep.subr.mxu0 0.0
    %984 = vmatpush1.msra.mxu0 0.0
    %985 = vmatprep.subr.mxu0 0.0
    %986 = vmatpush1.msra.mxu0 0.0
    %987 = vmatprep.subr.mxu0 0.0
    %988 = vmatpush1.msra.mxu0 0.0
    %989 = vmatprep.subr.mxu0 0.0
    %990 = vmatpush1.msra.mxu0 0.0
    %991 = vmatprep.subr.mxu0 0.0
    %992 = vmatpush1.msra.mxu0 0.0
    %993 = vmatprep.subr.mxu0 0.0
    %994 = vmatpush1.msra.mxu0 0.0
    %995 = vmatprep.subr.mxu0 0.0
    %996 = vmatpush1.msra.mxu0 0.0
    %997 = vmatprep.subr.mxu0 0.0
    %998 = vmatpush1.msra.mxu0 0.0
    %999 = vmatprep.subr.mxu0 0.0
    %1000 = vmatpush1.msra.mxu0 0.0
    %1001 = vmatprep.subr.mxu0 0.0
    %1002 = vmatpush1.msra.mxu0 0.0
    %1003 = vmatprep.subr.mxu0 0.0
    %1004 = vmatpush1.msra.mxu0 0.0
    %1005 = vmatprep.subr.mxu0 0.0
    %1006 = vmatpush1.msra.mxu0 0.0
    %1007 = vmatprep.subr.mxu0 0.0
    %1008 = vmatpush1.msra.mxu0 0.0
    %1009 = vmatprep.subr.mxu0 0.0
    %1010 = vmatpush1.msra.mxu0 0.0
    %1011 = vmatprep.subr.mxu0 0.0
    %1012 = vmatpush1.msra.mxu0 0.0
    %1013 = vmatprep.subr.mxu0 0.0
    %1014 = vmatpush1.msra.mxu0 0.0
    %1015 = vmatprep.subr.mxu0 0.0
    %1016 = vmatpush1.msra.mxu0 0.0
    %1017 = vmatprep.subr.mxu0 0.0
    %1018 = vmatpush1.msra.mxu0 0.0
    %1019 = vmatprep.subr.mxu0 0.0
    %1020 = vmatpush1.msra.mxu0 0.0
    %1021 = vmatprep.subr.mxu0 0.0
    %1022 = vmatpush1.msra.mxu0 0.0
    %1023 = vmatprep.subr.mxu0 0.0
    %1024 = vmatpush1.msra.mxu0 0.0
    %1025 = vmatprep.subr.mxu0 0.0
    %1026 = vmatpush1.msra.mxu0 0.0
    %1027 = vmatprep.subr.mxu0 0.0
    %1028 = vmatpush1.msra.mxu0 0.0
    %1029 = vmatprep.subr.mxu0 0.0
    %1030 = vmatpush1.msra.mxu0 0.0
    %1031 = vmatprep.subr.mxu0 0.0
    %1032 = vmatpush1.msra.mxu0 0.0
    %1033 = vmatprep.subr.mxu0 0.0
    %1034 = vmatpush1.msra.mxu0 0.0
    %1035 = vmatprep.subr.mxu0 0.0
    %1036 = vmatpush1.msra.mxu0 0.0
    %1037 = vmatprep.mubr.f32.mxu0 0.0
    %1038 = vmatmul.mubr.f32.gmra.mrb[0].mxu0 %v322
    %v1039 = vpop.f32.mrb[0].mxu0
    %v1040 = vadd.f32 0.0, %v1039
    %v1041 = vpop.f32.mrb[0].mxu0
    %1042 = vmatprep.mubr.f32.mxu0 0.0
    %1043 = vmatmul.mubr.f32.gmra.mrb[0].mxu0 %v325
    %v1044 = vpop.f32.mrb[0].mxu0
    %v1045 = vadd.f32 0.0, %v1044
    %v1046 = vpop.f32.mrb[0].mxu0
    %1047 = vdwg.mxu0
    %v1048 = vld [vmem:[%s10] sm:$0xff]
    %v1049 = vld [vmem:[%s10 + $0x8] sm:$0xff]
    %v1050 = vld [vmem:[%s10 + $0x10] sm:$0xff]
    %v1051 = vld [vmem:[%s10 + $0x18] sm:$0xff]
    %v1052 = vld [vmem:[%s10 + $0x20] sm:$0xff]
    %v1053 = vld [vmem:[%s10 + $0x28] sm:$0xff]
    %v1054 = vld [vmem:[%s10 + $0x30] sm:$0xff]
    %v1055 = vld [vmem:[%s10 + $0x38] sm:$0xff]
    %v1056 = vld [vmem:[%s10 + $0x40] sm:$0xff]
    %v1057 = vld [vmem:[%s10 + $0x48] sm:$0xff]
    %v1058 = vld [vmem:[%s10 + $0x50] sm:$0xff]
    %v1059 = vld [vmem:[%s10 + $0x58] sm:$0xff]
    %v1060 = vld [vmem:[%s10 + $0x60] sm:$0xff]
    %v1061 = vld [vmem:[%s10 + $0x68] sm:$0xff]
    %v1062 = vld [vmem:[%s10 + $0x70] sm:$0xff]
    %v1063 = vld [vmem:[%s10 + $0x78] sm:$0xff]
    %v1064 = vld [vmem:[%s10 + $0x80] sm:$0xff]
    %v1065 = vld [vmem:[%s10 + $0x88] sm:$0xff]
    %v1066 = vld [vmem:[%s10 + $0x90] sm:$0xff]
    %v1067 = vld [vmem:[%s10 + $0x98] sm:$0xff]
    %v1068 = vld [vmem:[%s10 + $0xa0] sm:$0xff]
    %v1069 = vld [vmem:[%s10 + $0xa8] sm:$0xff]
    %v1070 = vld [vmem:[%s10 + $0xb0] sm:$0xff]
    %v1071 = vld [vmem:[%s10 + $0xb8] sm:$0xff]
    %v1072 = vld [vmem:[%s10 + $0xc0] sm:$0xff]
    %v1073 = vld [vmem:[%s10 + $0xc8] sm:$0xff]
    %v1074 = vld [vmem:[%s10 + $0xd0] sm:$0xff]
    %v1075 = vld [vmem:[%s10 + $0xd8] sm:$0xff]
    %v1076 = vld [vmem:[%s10 + $0xe0] sm:$0xff]
    %v1077 = vld [vmem:[%s10 + $0xe8] sm:$0xff]
    %v1078 = vld [vmem:[%s10 + $0xf0] sm:$0xff]
    %v1079 = vld [vmem:[%s10 + $0xf8] sm:$0xff]
    %v1080 = vld [vmem:[%s10 + $0x100] sm:$0xff]
    %v1081 = vld [vmem:[%s10 + $0x108] sm:$0xff]
    %v1082 = vld [vmem:[%s10 + $0x110] sm:$0xff]
    %v1083 = vld [vmem:[%s10 + $0x118] sm:$0xff]
    %v1084 = vld [vmem:[%s10 + $0x120] sm:$0xff]
    %v1085 = vld [vmem:[%s10 + $0x128] sm:$0xff]
    %v1086 = vld [vmem:[%s10 + $0x130] sm:$0xff]
    %v1087 = vld [vmem:[%s10 + $0x138] sm:$0xff]
    %v1088 = vld [vmem:[%s10 + $0x140] sm:$0xff]
    %v1089 = vld [vmem:[%s10 + $0x148] sm:$0xff]
    %v1090 = vld [vmem:[%s10 + $0x150] sm:$0xff]
    %v1091 = vld [vmem:[%s10 + $0x158] sm:$0xff]
    %v1092 = vld [vmem:[%s10 + $0x160] sm:$0xff]
    %v1093 = vld [vmem:[%s10 + $0x168] sm:$0xff]
    %v1094 = vld [vmem:[%s10 + $0x170] sm:$0xff]
    %v1095 = vld [vmem:[%s10 + $0x178] sm:$0xff]
    %v1096 = vld [vmem:[%s10 + $0x180] sm:$0xff]
    %v1097 = vld [vmem:[%s10 + $0x188] sm:$0xff]
    %v1098 = vld [vmem:[%s10 + $0x190] sm:$0xff]
    %v1099 = vld [vmem:[%s10 + $0x198] sm:$0xff]
    %v1100 = vld [vmem:[%s10 + $0x1a0] sm:$0xff]
    %v1101 = vld [vmem:[%s10 + $0x1a8] sm:$0xff]
    %v1102 = vld [vmem:[%s10 + $0x1b0] sm:$0xff]
    %v1103 = vld [vmem:[%s10 + $0x1b8] sm:$0xff]
    %v1104 = vld [vmem:[%s10 + $0x1c0] sm:$0xff]
    %v1105 = vld [vmem:[%s10 + $0x1c8] sm:$0xff]
    %v1106 = vld [vmem:[%s10 + $0x1d0] sm:$0xff]
    %v1107 = vld [vmem:[%s10 + $0x1d8] sm:$0xff]
    %v1108 = vld [vmem:[%s10 + $0x1e0] sm:$0xff]
    %v1109 = vld [vmem:[%s10 + $0x1e8] sm:$0xff]
    %v1110 = vld [vmem:[%s10 + $0x1f0] sm:$0xff]
    %v1111 = vld [vmem:[%s10 + $0x1f8] sm:$0xff]
    %v1112 = vld [vmem:[%s10 + $0x200] sm:$0xff]
    %v1113 = vld [vmem:[%s10 + $0x208] sm:$0xff]
    %v1114 = vld [vmem:[%s10 + $0x210] sm:$0xff]
    %v1115 = vld [vmem:[%s10 + $0x218] sm:$0xff]
    %v1116 = vld [vmem:[%s10 + $0x220] sm:$0xff]
    %v1117 = vld [vmem:[%s10 + $0x228] sm:$0xff]
    %v1118 = vld [vmem:[%s10 + $0x230] sm:$0xff]
    %v1119 = vld [vmem:[%s10 + $0x238] sm:$0xff]
    %v1120 = vld [vmem:[%s10 + $0x240] sm:$0xff]
    %v1121 = vld [vmem:[%s10 + $0x248] sm:$0xff]
    %v1122 = vld [vmem:[%s10 + $0x250] sm:$0xff]
    %v1123 = vld [vmem:[%s10 + $0x258] sm:$0xff]
    %v1124 = vld [vmem:[%s10 + $0x260] sm:$0xff]
    %v1125 = vld [vmem:[%s10 + $0x268] sm:$0xff]
    %v1126 = vld [vmem:[%s10 + $0x270] sm:$0xff]
    %v1127 = vld [vmem:[%s10 + $0x278] sm:$0xff]
    %v1128 = vld [vmem:[%s10 + $0x280] sm:$0xff]
    %v1129 = vld [vmem:[%s10 + $0x288] sm:$0xff]
    %v1130 = vld [vmem:[%s10 + $0x290] sm:$0xff]
    %v1131 = vld [vmem:[%s10 + $0x298] sm:$0xff]
    %v1132 = vld [vmem:[%s10 + $0x2a0] sm:$0xff]
    %v1133 = vld [vmem:[%s10 + $0x2a8] sm:$0xff]
    %v1134 = vld [vmem:[%s10 + $0x2b0] sm:$0xff]
    %v1135 = vld [vmem:[%s10 + $0x2b8] sm:$0xff]
    %v1136 = vld [vmem:[%s10 + $0x2c0] sm:$0xff]
    %v1137 = vld [vmem:[%s10 + $0x2c8] sm:$0xff]
    %v1138 = vld [vmem:[%s10 + $0x2d0] sm:$0xff]
    %v1139 = vld [vmem:[%s10 + $0x2d8] sm:$0xff]
    %v1140 = vld [vmem:[%s10 + $0x2e0] sm:$0xff]
    %v1141 = vld [vmem:[%s10 + $0x2e8] sm:$0xff]
    %v1142 = vld [vmem:[%s10 + $0x2f0] sm:$0xff]
    %v1143 = vld [vmem:[%s10 + $0x2f8] sm:$0xff]
    %1144 = vmatprep.subr.mxu0 %v1081
    %1145 = vmatpush1.msra.mxu0 %v1080
    %1146 = vmatprep.subr.mxu0 %v1083
    %1147 = vmatpush1.msra.mxu0 %v1082
    %1148 = vmatprep.subr.mxu0 %v1085
    %1149 = vmatpush1.msra.mxu0 %v1084
    %1150 = vmatprep.subr.mxu0 %v1087
    %1151 = vmatpush1.msra.mxu0 %v1086
    %1152 = vmatprep.subr.mxu0 %v1089
    %1153 = vmatpush1.msra.mxu0 %v1088
    %1154 = vmatprep.subr.mxu0 %v1091
    %1155 = vmatpush1.msra.mxu0 %v1090
    %1156 = vmatprep.subr.mxu0 %v1093
    %1157 = vmatpush1.msra.mxu0 %v1092
    %1158 = vmatprep.subr.mxu0 %v1095
    %1159 = vmatpush1.msra.mxu0 %v1094
    %1160 = vmatprep.subr.mxu0 %v1097
    %1161 = vmatpush1.msra.mxu0 %v1096
    %1162 = vmatprep.subr.mxu0 %v1099
    %1163 = vmatpush1.msra.mxu0 %v1098
    %1164 = vmatprep.subr.mxu0 %v1101
    %1165 = vmatpush1.msra.mxu0 %v1100
    %1166 = vmatprep.subr.mxu0 %v1103
    %1167 = vmatpush1.msra.mxu0 %v1102
    %1168 = vmatprep.subr.mxu0 %v1105
    %1169 = vmatpush1.msra.mxu0 %v1104
    %1170 = vmatprep.subr.mxu0 %v1107
    %1171 = vmatpush1.msra.mxu0 %v1106
    %1172 = vmatprep.subr.mxu0 %v1109
    %1173 = vmatpush1.msra.mxu0 %v1108
    %1174 = vmatprep.subr.mxu0 %v1111
    %1175 = vmatpush1.msra.mxu0 %v1110
    %1176 = vmatprep.subr.mxu0 0.0
    %1177 = vmatpush1.msra.mxu0 0.0
    %1178 = vmatprep.subr.mxu0 0.0
    %1179 = vmatpush1.msra.mxu0 0.0
    %1180 = vmatprep.subr.mxu0 0.0
    %1181 = vmatpush1.msra.mxu0 0.0
    %1182 = vmatprep.subr.mxu0 0.0
    %1183 = vmatpush1.msra.mxu0 0.0
    %1184 = vmatprep.subr.mxu0 0.0
    %1185 = vmatpush1.msra.mxu0 0.0
    %1186 = vmatprep.subr.mxu0 0.0
    %1187 = vmatpush1.msra.mxu0 0.0
    %1188 = vmatprep.subr.mxu0 0.0
    %1189 = vmatpush1.msra.mxu0 0.0
    %1190 = vmatprep.subr.mxu0 0.0
    %1191 = vmatpush1.msra.mxu0 0.0
    %1192 = vmatprep.subr.mxu0 0.0
    %1193 = vmatpush1.msra.mxu0 0.0
    %1194 = vmatprep.subr.mxu0 0.0
    %1195 = vmatpush1.msra.mxu0 0.0
    %1196 = vmatprep.subr.mxu0 0.0
    %1197 = vmatpush1.msra.mxu0 0.0
    %1198 = vmatprep.subr.mxu0 0.0
    %1199 = vmatpush1.msra.mxu0 0.0
    %1200 = vmatprep.subr.mxu0 0.0
    %1201 = vmatpush1.msra.mxu0 0.0
    %1202 = vmatprep.subr.mxu0 0.0
    %1203 = vmatpush1.msra.mxu0 0.0
    %1204 = vmatprep.subr.mxu0 0.0
    %1205 = vmatpush1.msra.mxu0 0.0
    %1206 = vmatprep.subr.mxu0 0.0
    %1207 = vmatpush1.msra.mxu0 0.0
    %1208 = vmatprep.mubr.f32.mxu0 0.0
    %1209 = vmatmul.mubr.f32.gmra.mrb[0].mxu0 %v1040
    %v1210 = vpop.f32.mrb[0].mxu0
    %v1211 = vadd.f32 0.0, %v1210
    %v1212 = vpop.f32.mrb[0].mxu0
    %v1213 = vadd.f32 0.0, %v1212
    %1214 = vmatprep.mubr.f32.mxu0 0.0
    %1215 = vmatmul.mubr.f32.gmra.mrb[0].mxu0 %v1045
    %v1216 = vpop.f32.mrb[0].mxu0
    %v1217 = vadd.f32 0.0, %v1216
    %v1218 = vpop.f32.mrb[0].mxu0
    %v1219 = vadd.f32 0.0, %v1218
    %1220 = vdwg.mxu0
    %1221 = vmatprep.subr.mxu0 %v1049
    %1222 = vmatpush1.msra.mxu0 %v1048
    %1223 = vmatprep.subr.mxu0 %v1051
    %1224 = vmatpush1.msra.mxu0 %v1050
    %1225 = vmatprep.subr.mxu0 %v1053
    %1226 = vmatpush1.msra.mxu0 %v1052
    %1227 = vmatprep.subr.mxu0 %v1055
    %1228 = vmatpush1.msra.mxu0 %v1054
    %1229 = vmatprep.subr.mxu0 %v1057
    %1230 = vmatpush1.msra.mxu0 %v1056
    %1231 = vmatprep.subr.mxu0 %v1059
    %1232 = vmatpush1.msra.mxu0 %v1058
    %1233 = vmatprep.subr.mxu0 %v1061
    %1234 = vmatpush1.msra.mxu0 %v1060
    %1235 = vmatprep.subr.mxu0 %v1063
    %1236 = vmatpush1.msra.mxu0 %v1062
    %1237 = vmatprep.subr.mxu0 %v1065
    %1238 = vmatpush1.msra.mxu0 %v1064
    %1239 = vmatprep.subr.mxu0 %v1067
    %1240 = vmatpush1.msra.mxu0 %v1066
    %1241 = vmatprep.subr.mxu0 %v1069
    %1242 = vmatpush1.msra.mxu0 %v1068
    %1243 = vmatprep.subr.mxu0 %v1071
    %1244 = vmatpush1.msra.mxu0 %v1070
    %1245 = vmatprep.subr.mxu0 %v1073
    %1246 = vmatpush1.msra.mxu0 %v1072
    %1247 = vmatprep.subr.mxu0 %v1075
    %1248 = vmatpush1.msra.mxu0 %v1074
    %1249 = vmatprep.subr.mxu0 %v1077
    %1250 = vmatpush1.msra.mxu0 %v1076
    %1251 = vmatprep.subr.mxu0 %v1079
    %1252 = vmatpush1.msra.mxu0 %v1078
    %1253 = vmatprep.subr.mxu0 0.0
    %1254 = vmatpush1.msra.mxu0 0.0
    %1255 = vmatprep.subr.mxu0 0.0
    %1256 = vmatpush1.msra.mxu0 0.0
    %1257 = vmatprep.subr.mxu0 0.0
    %1258 = vmatpush1.msra.mxu0 0.0
    %1259 = vmatprep.subr.mxu0 0.0
    %1260 = vmatpush1.msra.mxu0 0.0
    %1261 = vmatprep.subr.mxu0 0.0
    %1262 = vmatpush1.msra.mxu0 0.0
    %1263 = vmatprep.subr.mxu0 0.0
    %1264 = vmatpush1.msra.mxu0 0.0
    %1265 = vmatprep.subr.mxu0 0.0
    %1266 = vmatpush1.msra.mxu0 0.0
    %1267 = vmatprep.subr.mxu0 0.0
    %1268 = vmatpush1.msra.mxu0 0.0
    %1269 = vmatprep.subr.mxu0 0.0
    %1270 = vmatpush1.msra.mxu0 0.0
    %1271 = vmatprep.subr.mxu0 0.0
    %1272 = vmatpush1.msra.mxu0 0.0
    %1273 = vmatprep.subr.mxu0 0.0
    %1274 = vmatpush1.msra.mxu0 0.0
    %1275 = vmatprep.subr.mxu0 0.0
    %1276 = vmatpush1.msra.mxu0 0.0
    %1277 = vmatprep.subr.mxu0 0.0
    %1278 = vmatpush1.msra.mxu0 0.0
    %1279 = vmatprep.subr.mxu0 0.0
    %1280 = vmatpush1.msra.mxu0 0.0
    %1281 = vmatprep.subr.mxu0 0.0
    %1282 = vmatpush1.msra.mxu0 0.0
    %1283 = vmatprep.subr.mxu0 0.0
    %1284 = vmatpush1.msra.mxu0 0.0
    %1285 = vmatprep.mubr.f32.mxu0 0.0
    %1286 = vmatmul.mubr.f32.gmra.mrb[0].mxu0 %v965
    %v1287 = vpop.f32.mrb[0].mxu0
    %v1288 = vadd.f32 %v1211, %v1287
    %v1289 = vpop.f32.mrb[0].mxu0
    %v1290 = vadd.f32 %v1213, %v1289
    %1291 = vmatprep.mubr.f32.mxu0 0.0
    %1292 = vmatmul.mubr.f32.gmra.mrb[0].mxu0 %v970
    %v1293 = vpop.f32.mrb[0].mxu0
    %v1294 = vadd.f32 %v1217, %v1293
    %v1295 = vpop.f32.mrb[0].mxu0
    %v1296 = vadd.f32 %v1219, %v1295
    %1297 = vdwg.mxu0
    %1298 = vmatprep.subr.mxu0 %v1113
    %1299 = vmatpush1.msra.mxu0 %v1112
    %1300 = vmatprep.subr.mxu0 %v1115
    %1301 = vmatpush1.msra.mxu0 %v1114
    %1302 = vmatprep.subr.mxu0 %v1117
    %1303 = vmatpush1.msra.mxu0 %v1116
    %1304 = vmatprep.subr.mxu0 %v1119
    %1305 = vmatpush1.msra.mxu0 %v1118
    %1306 = vmatprep.subr.mxu0 %v1121
    %1307 = vmatpush1.msra.mxu0 %v1120
    %1308 = vmatprep.subr.mxu0 %v1123
    %1309 = vmatpush1.msra.mxu0 %v1122
    %1310 = vmatprep.subr.mxu0 %v1125
    %1311 = vmatpush1.msra.mxu0 %v1124
    %1312 = vmatprep.subr.mxu0 %v1127
    %1313 = vmatpush1.msra.mxu0 %v1126
    %1314 = vmatprep.subr.mxu0 %v1129
    %1315 = vmatpush1.msra.mxu0 %v1128
    %1316 = vmatprep.subr.mxu0 %v1131
    %1317 = vmatpush1.msra.mxu0 %v1130
    %1318 = vmatprep.subr.mxu0 %v1133
    %1319 = vmatpush1.msra.mxu0 %v1132
    %1320 = vmatprep.subr.mxu0 %v1135
    %1321 = vmatpush1.msra.mxu0 %v1134
    %1322 = vmatprep.subr.mxu0 %v1137
    %1323 = vmatpush1.msra.mxu0 %v1136
    %1324 = vmatprep.subr.mxu0 %v1139
    %1325 = vmatpush1.msra.mxu0 %v1138
    %1326 = vmatprep.subr.mxu0 %v1141
    %1327 = vmatpush1.msra.mxu0 %v1140
    %1328 = vmatprep.subr.mxu0 %v1143
    %1329 = vmatpush1.msra.mxu0 %v1142
    %1330 = vmatprep.subr.mxu0 0.0
    %1331 = vmatpush1.msra.mxu0 0.0
    %1332 = vmatprep.subr.mxu0 0.0
    %1333 = vmatpush1.msra.mxu0 0.0
    %1334 = vmatprep.subr.mxu0 0.0
    %1335 = vmatpush1.msra.mxu0 0.0
    %1336 = vmatprep.subr.mxu0 0.0
    %1337 = vmatpush1.msra.mxu0 0.0
    %1338 = vmatprep.subr.mxu0 0.0
    %1339 = vmatpush1.msra.mxu0 0.0
    %1340 = vmatprep.subr.mxu0 0.0
    %1341 = vmatpush1.msra.mxu0 0.0
    %1342 = vmatprep.subr.mxu0 0.0
    %1343 = vmatpush1.msra.mxu0 0.0
    %1344 = vmatprep.subr.mxu0 0.0
    %1345 = vmatpush1.msra.mxu0 0.0
    %1346 = vmatprep.subr.mxu0 0.0
    %1347 = vmatpush1.msra.mxu0 0.0
    %1348 = vmatprep.subr.mxu0 0.0
    %1349 = vmatpush1.msra.mxu0 0.0
    %1350 = vmatprep.subr.mxu0 0.0
    %1351 = vmatpush1.msra.mxu0 0.0
    %1352 = vmatprep.subr.mxu0 0.0
    %1353 = vmatpush1.msra.mxu0 0.0
    %1354 = vmatprep.subr.mxu0 0.0
    %1355 = vmatpush1.msra.mxu0 0.0
    %1356 = vmatprep.subr.mxu0 0.0
    %1357 = vmatpush1.msra.mxu0 0.0
    %1358 = vmatprep.subr.mxu0 0.0
    %1359 = vmatpush1.msra.mxu0 0.0
    %1360 = vmatprep.subr.mxu0 0.0
    %1361 = vmatpush1.msra.mxu0 0.0
    %1362 = vmatprep.mubr.f32.mxu0 0.0
    %1363 = vmatmul.mubr.f32.gmra.mrb[0].mxu0 %v223
    %v1364 = vpop.f32.mrb[0].mxu0
    %v1365 = vadd.f32 0.0, %v1364
    %v1366 = vpop.f32.mrb[0].mxu0
    %v1367 = vadd.f32 0.0, %v1366
    %1368 = vmatprep.mubr.f32.mxu0 0.0
    %1369 = vmatmul.mubr.f32.gmra.mrb[0].mxu0 %v228
    %v1370 = vpop.f32.mrb[0].mxu0
    %v1371 = vadd.f32 0.0, %v1370
    %v1372 = vpop.f32.mrb[0].mxu0
    %v1373 = vadd.f32 0.0, %v1372
    %1374 = vdwg.mxu0
    %v1375 = vadd.f32 %v1288, %v1365
    %v1376 = vadd.f32 %v1290, %v1367
    %v1377 = vadd.f32 %v1294, %v1371
    %v1378 = vadd.f32 %v1296, %v1373
    %v1379 = vld [vmem:[%s11] sm:$0x3]
    %v1381 = vlaneseq
    %v1382 = vshrl.u32 %v1381, 7
    %v1383 = vsub.s32 0, %v1382
    %v1384 = vrot.slane %v1379, %v1383
    %v1385 = vlaneseq
    %v1386 = vshrl.u32 %v1385, 7
    %v1387 = vsub.s32 1, %v1386
    %v1388 = vrot.slane %v1379, %v1387
    %v1391 = vadd.f32 %v1375, %v1384
    %v1392 = vadd.f32 %v1376, %v1388
    %v1393 = vadd.f32 %v1377, %v1384
    %v1394 = vadd.f32 %v1378, %v1388
    %v1395 = vsub.f32 0.0, %v1391
    %v1396 = vsub.f32 0.0, %v1393
    %v1397 = vmul.f32 %v1395, 1.442695
    %v1398 = vpow.pop %v1397
    %v1399 = vmul.f32 %v1396, 1.442695
    %v1400 = vpow.pop %v1399
    %v1401 = vadd.f32 %v1398, 1.0
    %v1402 = vadd.f32 %v1400, 1.0
    %v1403 = vrcp.pop %v1401
    %v1404 = vrcp.pop %v1402
    %v1405 = vmax.f32 %v1392, 0.0
    %v1406 = vmax.f32 %v1394, 0.0
    %v1407 = vand.u32 2147483647, %v1392
    %v1408 = vand.u32 2147483647, %v1394
    %v1409 = vsub.f32 0.0, %v1407
    %v1410 = vsub.f32 0.0, %v1408
    %v1411 = vmul.f32 %v1409, 1.442695
    %v1412 = vpow.pop %v1411
    %v1413 = vmul.f32 %v1410, 1.442695
    %v1414 = vpow.pop %v1413
    %v1415 = vadd.f32 %v1412, 1.0
    %v1416 = vlog2.pop %v1415
    %v1417 = vmul.f32 %v1416, 0.6931472
    %v1418 = vmul.f32 -0.5, %v1412
    %v1419 = vadd.f32 %v1418, 1.0
    %v1420 = vmul.f32 %v1419, %v1412
    %v1421 = vand.u32 2147483647, %v1412
    %vm1422 = vcmp.lt.f32.partialorder %v1421, 0.0004427343
    %v1423 = vsel %vm1422, %v1420, %v1417
    %v1424 = vadd.f32 %v1414, 1.0
    %v1425 = vlog2.pop %v1424
    %v1426 = vmul.f32 %v1425, 0.6931472
    %v1427 = vmul.f32 -0.5, %v1414
    %v1428 = vadd.f32 %v1427, 1.0
    %v1429 = vmul.f32 %v1428, %v1414
    %v1430 = vand.u32 2147483647, %v1414
    %vm1431 = vcmp.lt.f32.partialorder %v1430, 0.0004427343
    %v1432 = vsel %vm1431, %v1429, %v1426
    %v1433 = vadd.f32 %v1405, %v1423
    %v1434 = vadd.f32 %v1406, %v1432
    %v1435 = vmul.f32 %v1403, %v1433
    %v1436 = vmul.f32 %v1404, %v1434
    %1437 = vmatprep.subr.mxu0 0.0
    %1438 = vmatpush1.msra.mxu0 %v1435
    %1439 = vmatprep.subr.mxu0 0.0
    %1440 = vmatpush1.msra.mxu0 %v1436
    %1441 = vmatprep.subr.mxu0 0.0
    %1442 = vmatpush1.msra.mxu0 0.0
    %1443 = vmatprep.subr.mxu0 0.0
    %1444 = vmatpush1.msra.mxu0 0.0
    %1445 = vmatprep.subr.mxu0 0.0
    %1446 = vmatpush1.msra.mxu0 0.0
    %1447 = vmatprep.subr.mxu0 0.0
    %1448 = vmatpush1.msra.mxu0 0.0
    %1449 = vmatprep.subr.mxu0 0.0
    %1450 = vmatpush1.msra.mxu0 0.0
    %1451 = vmatprep.subr.mxu0 0.0
    %1452 = vmatpush1.msra.mxu0 0.0
    %1453 = vmatprep.subr.mxu0 0.0
    %1454 = vmatpush1.msra.mxu0 0.0
    %1455 = vmatprep.subr.mxu0 0.0
    %1456 = vmatpush1.msra.mxu0 0.0
    %1457 = vmatprep.subr.mxu0 0.0
    %1458 = vmatpush1.msra.mxu0 0.0
    %1459 = vmatprep.subr.mxu0 0.0
    %1460 = vmatpush1.msra.mxu0 0.0
    %1461 = vmatprep.subr.mxu0 0.0
    %1462 = vmatpush1.msra.mxu0 0.0
    %1463 = vmatprep.subr.mxu0 0.0
    %1464 = vmatpush1.msra.mxu0 0.0
    %1465 = vmatprep.subr.mxu0 0.0
    %1466 = vmatpush1.msra.mxu0 0.0
    %1467 = vmatprep.subr.mxu0 0.0
    %1468 = vmatpush1.msra.mxu0 0.0
    %1469 = vmatprep.subr.mxu0 0.0
    %1470 = vmatpush1.msra.mxu0 0.0
    %1471 = vmatprep.subr.mxu0 0.0
    %1472 = vmatpush1.msra.mxu0 0.0
    %1473 = vmatprep.subr.mxu0 0.0
    %1474 = vmatpush1.msra.mxu0 0.0
    %1475 = vmatprep.subr.mxu0 0.0
    %1476 = vmatpush1.msra.mxu0 0.0
    %1477 = vmatprep.subr.mxu0 0.0
    %1478 = vmatpush1.msra.mxu0 0.0
    %1479 = vmatprep.subr.mxu0 0.0
    %1480 = vmatpush1.msra.mxu0 0.0
    %1481 = vmatprep.subr.mxu0 0.0
    %1482 = vmatpush1.msra.mxu0 0.0
    %1483 = vmatprep.subr.mxu0 0.0
    %1484 = vmatpush1.msra.mxu0 0.0
    %1485 = vmatprep.subr.mxu0 0.0
    %1486 = vmatpush1.msra.mxu0 0.0
    %1487 = vmatprep.subr.mxu0 0.0
    %1488 = vmatpush1.msra.mxu0 0.0
    %1489 = vmatprep.subr.mxu0 0.0
    %1490 = vmatpush1.msra.mxu0 0.0
    %1491 = vmatprep.subr.mxu0 0.0
    %1492 = vmatpush1.msra.mxu0 0.0
    %1493 = vmatprep.subr.mxu0 0.0
    %1494 = vmatpush1.msra.mxu0 0.0
    %1495 = vmatprep.subr.mxu0 0.0
    %1496 = vmatpush1.msra.mxu0 0.0
    %1497 = vmatprep.subr.mxu0 0.0
    %1498 = vmatpush1.msra.mxu0 0.0
    %1499 = vmatprep.subr.mxu0 0.0
    %1500 = vmatpush1.msra.mxu0 0.0
    %1501 = vmatprep.mubr.f32.mxu0 0.0
    %1502 = vmatmul.mubr.f32.gmra.mrb[0].mxu0 %v825
    %v1503 = vpop.f32.mrb[0].mxu0
    %v1504 = vadd.f32 %v897, %v1503
    %v1505 = vpop.f32.mrb[0].mxu0
    %1506 = vdwg.mxu0
    %v1507 = vmax.f32 %v1504, 0.0
    %v1508 = vld [vmem:[%s12] sm:$0xff]
    %v1509 = vld [vmem:[%s12 + $0x8] sm:$0xff]
    %v1510 = vld [vmem:[%s12 + $0x10] sm:$0xff]
    %v1511 = vld [vmem:[%s12 + $0x18] sm:$0xff]
    %v1512 = vld [vmem:[%s12 + $0x20] sm:$0xff]
    %v1513 = vld [vmem:[%s12 + $0x28] sm:$0xff]
    %v1514 = vld [vmem:[%s12 + $0x30] sm:$0xff]
    %v1515 = vld [vmem:[%s12 + $0x38] sm:$0xff]
    %v1516 = vld [vmem:[%s12 + $0x40] sm:$0xff]
    %v1517 = vld [vmem:[%s12 + $0x48] sm:$0xff]
    %v1518 = vld [vmem:[%s12 + $0x50] sm:$0xff]
    %v1519 = vld [vmem:[%s12 + $0x58] sm:$0xff]
    %v1520 = vld [vmem:[%s12 + $0x60] sm:$0xff]
    %v1521 = vld [vmem:[%s12 + $0x68] sm:$0xff]
    %v1522 = vld [vmem:[%s12 + $0x70] sm:$0xff]
    %v1523 = vld [vmem:[%s12 + $0x78] sm:$0xff]
    %v1524 = vld [vmem:[%s13] sm:$0x1]
    %v1526 = vlaneseq
    %v1527 = vshrl.u32 %v1526, 7
    %v1528 = vsub.s32 0, %v1527
    %v1529 = vrot.slane %v1524, %v1528
    %1531 = vmatprep.subr.mxu0 0.0
    %1532 = vmatpush1.msra.mxu0 %v1508
    %1533 = vmatprep.subr.mxu0 0.0
    %1534 = vmatpush1.msra.mxu0 %v1509
    %1535 = vmatprep.subr.mxu0 0.0
    %1536 = vmatpush1.msra.mxu0 %v1510
    %1537 = vmatprep.subr.mxu0 0.0
    %1538 = vmatpush1.msra.mxu0 %v1511
    %1539 = vmatprep.subr.mxu0 0.0
    %1540 = vmatpush1.msra.mxu0 %v1512
    %1541 = vmatprep.subr.mxu0 0.0
    %1542 = vmatpush1.msra.mxu0 %v1513
    %1543 = vmatprep.subr.mxu0 0.0
    %1544 = vmatpush1.msra.mxu0 %v1514
    %1545 = vmatprep.subr.mxu0 0.0
    %1546 = vmatpush1.msra.mxu0 %v1515
    %1547 = vmatprep.subr.mxu0 0.0
    %1548 = vmatpush1.msra.mxu0 %v1516
    %1549 = vmatprep.subr.mxu0 0.0
    %1550 = vmatpush1.msra.mxu0 %v1517
    %1551 = vmatprep.subr.mxu0 0.0
    %1552 = vmatpush1.msra.mxu0 %v1518
    %1553 = vmatprep.subr.mxu0 0.0
    %1554 = vmatpush1.msra.mxu0 %v1519
    %1555 = vmatprep.subr.mxu0 0.0
    %1556 = vmatpush1.msra.mxu0 %v1520
    %1557 = vmatprep.subr.mxu0 0.0
    %1558 = vmatpush1.msra.mxu0 %v1521
    %1559 = vmatprep.subr.mxu0 0.0
    %1560 = vmatpush1.msra.mxu0 %v1522
    %1561 = vmatprep.subr.mxu0 0.0
    %1562 = vmatpush1.msra.mxu0 %v1523
    %1563 = vmatprep.subr.mxu0 0.0
    %1564 = vmatpush1.msra.mxu0 0.0
    %1565 = vmatprep.subr.mxu0 0.0
    %1566 = vmatpush1.msra.mxu0 0.0
    %1567 = vmatprep.subr.mxu0 0.0
    %1568 = vmatpush1.msra.mxu0 0.0
    %1569 = vmatprep.subr.mxu0 0.0
    %1570 = vmatpush1.msra.mxu0 0.0
    %1571 = vmatprep.subr.mxu0 0.0
    %1572 = vmatpush1.msra.mxu0 0.0
    %1573 = vmatprep.subr.mxu0 0.0
    %1574 = vmatpush1.msra.mxu0 0.0
    %1575 = vmatprep.subr.mxu0 0.0
    %1576 = vmatpush1.msra.mxu0 0.0
    %1577 = vmatprep.subr.mxu0 0.0
    %1578 = vmatpush1.msra.mxu0 0.0
    %1579 = vmatprep.subr.mxu0 0.0
    %1580 = vmatpush1.msra.mxu0 0.0
    %1581 = vmatprep.subr.mxu0 0.0
    %1582 = vmatpush1.msra.mxu0 0.0
    %1583 = vmatprep.subr.mxu0 0.0
    %1584 = vmatpush1.msra.mxu0 0.0
    %1585 = vmatprep.subr.mxu0 0.0
    %1586 = vmatpush1.msra.mxu0 0.0
    %1587 = vmatprep.subr.mxu0 0.0
    %1588 = vmatpush1.msra.mxu0 0.0
    %1589 = vmatprep.subr.mxu0 0.0
    %1590 = vmatpush1.msra.mxu0 0.0
    %1591 = vmatprep.subr.mxu0 0.0
    %1592 = vmatpush1.msra.mxu0 0.0
    %1593 = vmatprep.subr.mxu0 0.0
    %1594 = vmatpush1.msra.mxu0 0.0
    %1595 = vmatprep.mubr.f32.mxu0 0.0
    %1596 = vmatmul.mubr.f32.gmra.mrb[0].mxu0 %v1507
    %v1597 = vpop.f32.mrb[0].mxu0
    %v1598 = vadd.f32 %v1529, %v1597
    %v1599 = vpop.f32.mrb[0].mxu0
    %1600 = vdwg.mxu0
    %1601 = vst [vmem:[#allocation2] sm:$0xff] %v1598
    // Predicated region
    $region58: #{cgcnn_forward.1} parent=1 // pred_check
      _
    $region59: #{cgcnn_forward.1} parent=1 // pred_check_branch
      %1603 = sbr.rel (0) target = $region61
    $region60: #{cgcnn_forward.1} parent=1 // pred_region
      %s1605 = ssub.s32 128, 128
      %1606 = vsyncadd [#allocation3], %s1605
      %s1608 = sshll.u32 [#allocation2], 4
      %s1609 = int_to_ptr.vmem [resolvable:$true] %s1608
      %1611 = dma.vmem_to_hbm [thread:$0]  %s1609, 128, %s14, [#allocation3]
    $region61: #{cgcnn_forward.1} parent=1 // pred_fallthru
      _
    // Predicated region
    $region62: #{cgcnn_forward.1} parent=1 // pred_check
      _
    $region63: #{cgcnn_forward.1} parent=1 // pred_check_branch
      %1613 = sbr.rel (0) target = $region65
    $region64: #{cgcnn_forward.1} parent=1 // pred_region
      %1614 = dma.done [#allocation3], 128
    $region65: #{cgcnn_forward.1} parent=1 // pred_fallthru
      _
    %1615 = vsyncpa [#allocation3], 1

</llo_original>
